<compile_context>
chip_gen: v7x
topology: tpu7x:2x2x1
jax: 0.10.0
libtpu: 0.0.40
codegen_flags: <defaults>
</compile_context>

<pallas_src>
from functools import lru_cache, partial

import jax
import jax.numpy as jnp
from jax.experimental import pallas as pl
from jax.experimental.pallas import tpu as pltpu


@lru_cache(maxsize=None)
def _make_filter_kernel(idx_lo, idx_hi):
    """Kernel over one (pc, tile) channel-split block of one level."""
    n_rows = idx_hi - idx_lo

    def kernel(thr_ref, x_ref, score_ref, mask_ref):
        thr = thr_ref[0]                                   # SMEM scalar threshold

        # max over the idx_range channels, per spatial location.
        if n_rows <= 8:
            # short range: unrolled maximum tree over single sublane rows
            mx = x_ref[idx_lo:idx_lo + 1, :]               # (1, tile)
            for c in range(idx_lo + 1, idx_hi):
                mx = jnp.maximum(mx, x_ref[c:c + 1, :])
        else:
            mx = jnp.max(x_ref[idx_lo:idx_hi, :], axis=0, keepdims=True)

        keep = mx >= thr                                   # (1, tile) bool

        # per-channel scores at kept locations, 0 elsewhere (scalar fill)
        score_ref[...] = jnp.where(keep, x_ref[...], 0.0)
        # 1-row keep mask; coord is reconstructed outside from constant planes
        mask_ref[...] = keep.astype(jnp.int32)

    return kernel


def _spatial_tile(HW):
    """Lane-dense spatial tile when possible, else the full extent."""
    if HW % 128 == 0:
        for t in (2048, 1024, 512, 256, 128):
            if HW % t == 0:
                return t
    return HW


def _filter_level(x0, thr, *, pc, idx_lo, idx_hi):
    """Filter image 0 of one pyramid level.

    x0:  (3*pc, H, W) -- image 0 of this level.
    thr: (1,) float32 threshold (SMEM scalar prefetch).

    Returns (coord (3,2,HW) int32, score (3,pc,HW), mask (3,1,HW) int32).
    """
    _, H, W = x0.shape
    HW = H * W
    x = x0.reshape(3, pc, HW)          # contiguous reshape: no pad, no HBM copy

    tile = _spatial_tile(HW)
    nt = HW // tile
    kernel = _make_filter_kernel(idx_lo, idx_hi)

    score, mask = pl.pallas_call(
        kernel,
        out_shape=(
            jax.ShapeDtypeStruct((3, pc, HW), x.dtype),    # per-loc scores
            jax.ShapeDtypeStruct((3, 1, HW), jnp.int32),   # keep mask
        ),
        grid_spec=pltpu.PrefetchScalarGridSpec(
            num_scalar_prefetch=1,
            grid=(3, nt),                                  # splits x spatial tiles
            in_specs=[
                pl.BlockSpec((None, pc, tile), lambda s, t, thr_ref: (s, 0, t)),
            ],
            out_specs=(
                pl.BlockSpec((None, pc, tile), lambda s, t, thr_ref: (s, 0, t)),
                pl.BlockSpec((None, 1, tile), lambda s, t, thr_ref: (s, 0, t)),
            ),
        ),
        compiler_params=pltpu.CompilerParams(
            dimension_semantics=("parallel", "parallel"),
        ),
    )(thr, x)

    # coord from constant (y, x) planes outside the kernel (pure iota, no div)
    y_plane = jax.lax.broadcasted_iota(jnp.int32, (H, W), 0).reshape(1, 1, HW)
    x_plane = jax.lax.broadcasted_iota(jnp.int32, (H, W), 1).reshape(1, 1, HW)
    planes = jnp.concatenate([y_plane, x_plane], axis=1)   # (1, 2, HW)
    keep = mask > 0                                        # (3, 1, HW) bool
    coord = jnp.where(keep, planes, -1)                    # (3, 2, HW) int32
    return coord, score, mask


@partial(jax.jit, static_argnames=("pc", "idx_lo", "idx_hi"))
def _yolo_filter_forward(preds, thr, *, pc, idx_lo, idx_hi):
    """Single fused dispatch over all pyramid levels (image 0 only)."""
    outs = []
    for p in preds:
        assert p.ndim == 4, "should be in NCHW layout"
        # torch module only keeps per_sample_outs[0] -> slice image 0 first
        coord, score, mask = _filter_level(
            p[0], thr, pc=pc, idx_lo=idx_lo, idx_hi=idx_hi
        )
        for s in range(3):
            outs.append((coord[s], score[s], mask[s]))
    # 3 levels x 3 splits = 9 (coord, score, mask) entries
    return tuple(outs)


class YOLOv3FilterJax:
    """JAX/Pallas port of hat YOLOv3Filter (dense / masked outputs, image 0)."""

    def __init__(self, strides, threshold, idx_range=None, last_channels=75):
        self.strides = strides
        self.num_level = len(strides)
        self.threshold = threshold
        self.idx_range = idx_range
        self.per_channels = int(last_channels / 3)
        self._thr = jnp.asarray([threshold], dtype=jnp.float32)

    def __call__(self, preds):
        pc = self.per_channels
        idx_lo, idx_hi = (0, pc) if self.idx_range is None else self.idx_range
        return _yolo_filter_forward(
            tuple(preds), self._thr, pc=pc, idx_lo=int(idx_lo), idx_hi=int(idx_hi)
        )


if __name__ == "__main__":
    # Small synthetic config: 3 levels, last_channels=12 -> per_channels=4.
    strides = (8, 16, 32)
    batch = 2
    last_channels = 12
    per_channels = last_channels // 3
    threshold = 0.5
    idx_range = (0, 2)        # max over first two channels of each split

    base_hw = 16              # level-0 spatial size; halves per level
    key = jax.random.PRNGKey(0)
    keys = jax.random.split(key, len(strides))

    preds = []
    for lvl, k in enumerate(keys):
        hw = base_hw // (2 ** lvl)          # 16, 8, 4
        preds.append(
            jax.random.normal(
                k, (batch, last_channels, hw, hw), dtype=jnp.float32
            )
        )

    model = YOLOv3FilterJax(
        strides=strides,
        threshold=threshold,
        idx_range=idx_range,
        last_channels=last_channels,
    )

    outs = model(preds)
    outs = jax.block_until_ready(outs)
    assert len(outs) == 9

    # full sanity check against pure-JAX reference for all 9 outputs
    pc = per_channels
    lo, hi = idx_range
    oidx = 0
    for lvl in range(len(strides)):
        p0 = preds[lvl][0]                       # image 0, (3*pc, H, W)
        H = W = p0.shape[-1]
        HW = H * W
        hw_ids = jnp.arange(HW, dtype=jnp.int32)[None, :]
        for s in range(3):
            x = p0[s * pc:(s + 1) * pc].reshape(pc, HW)
            mx = jnp.max(x[lo:hi], axis=0, keepdims=True)
            keep = mx >= threshold
            ref_score = jnp.where(keep, x, 0.0)
            ref_coord = jnp.concatenate(
                [jnp.where(keep, hw_ids // W, -1),
                 jnp.where(keep, hw_ids % W, -1)], axis=0
            ).astype(jnp.int32)
            ref_mask = keep.astype(jnp.int32)

            coord, score, mask = outs[oidx]
            assert coord.shape == (2, HW) and score.shape == (pc, HW)
            assert mask.shape == (1, HW)
            assert jnp.array_equal(coord, ref_coord)
            assert jnp.allclose(score, ref_score)
            assert jnp.array_equal(mask, ref_mask)
            oidx += 1

    print("KERNEL_OK")
</pallas_src>

<mosaic_0001>
module attributes {stable_mosaic.version = 11 : i64} {
  func.func @kernel(%arg0: i32, %arg1: i32, %arg2: memref<1xf32, #tpu.memory_space<smem>>, %arg3: memref<1x4x256xf32, #tpu.memory_space<vmem>>, %arg4: memref<1x4x256xf32, #tpu.memory_space<vmem>>, %arg5: memref<1x1x256xi32, #tpu.memory_space<vmem>>) attributes {dimension_semantics = [#tpu.dimension_semantics<parallel>, #tpu.dimension_semantics<parallel>], iteration_bounds = array<i64: 3, 1>, scalar_prefetch = 1 : i64, scratch_operands = 0 : i64, tpu.core_type = #tpu.core_type<tc>, window_params = [{transform_indices = @transform_0, window_bounds = array<i64: 1, 4, 256>}, {transform_indices = @transform_1, window_bounds = array<i64: 1, 4, 256>}, {transform_indices = @transform_2, window_bounds = array<i64: 1, 1, 256>}]} {
    %c0 = arith.constant 0 : index
    %0 = memref.load %arg2[%c0] : memref<1xf32, #tpu.memory_space<smem>>
    %c0_0 = arith.constant 0 : index
    %c0_1 = arith.constant 0 : index
    %c0_2 = arith.constant 0 : index
    %1 = vector.load %arg3[%c0_0, %c0_1, %c0_2] : memref<1x4x256xf32, #tpu.memory_space<vmem>>, vector<1x1x256xf32>
    %2 = vector.shape_cast %1 : vector<1x1x256xf32> to vector<1x256xf32>
    %c0_3 = arith.constant 0 : index
    %c1 = arith.constant 1 : index
    %c0_4 = arith.constant 0 : index
    %3 = vector.load %arg3[%c0_3, %c1, %c0_4] : memref<1x4x256xf32, #tpu.memory_space<vmem>>, vector<1x1x256xf32>
    %4 = vector.shape_cast %3 : vector<1x1x256xf32> to vector<1x256xf32>
    %5 = arith.maximumf %2, %4 : vector<1x256xf32>
    %6 = vector.broadcast %0 : f32 to vector<1x256xf32>
    %7 = arith.cmpf oge, %5, %6 : vector<1x256xf32>
    %c0_5 = arith.constant 0 : index
    %c0_6 = arith.constant 0 : index
    %c0_7 = arith.constant 0 : index
    %8 = vector.load %arg3[%c0_5, %c0_6, %c0_7] : memref<1x4x256xf32, #tpu.memory_space<vmem>>, vector<1x4x256xf32>
    %9 = vector.shape_cast %8 : vector<1x4x256xf32> to vector<4x256xf32>
    %cst = arith.constant 0.000000e+00 : f32
    %10 = vector.shape_cast %7 : vector<1x256xi1> to vector<1x256xi1>
    %11 = vector.broadcast %10 : vector<1x256xi1> to vector<4x256xi1>
    %12 = vector.broadcast %cst : f32 to vector<4x256xf32>
    %13 = arith.select %11, %9, %12 : vector<4x256xi1>, vector<4x256xf32>
    %c0_8 = arith.constant 0 : index
    %c0_9 = arith.constant 0 : index
    %c0_10 = arith.constant 0 : index
    %14 = vector.load %arg4[%c0_8, %c0_9, %c0_10] : memref<1x4x256xf32, #tpu.memory_space<vmem>>, vector<1x4x256xf32>
    %15 = vector.shape_cast %14 : vector<1x4x256xf32> to vector<4x256xf32>
    %16 = vector.shape_cast %13 : vector<4x256xf32> to vector<1x4x256xf32>
    tpu.vector_store %arg4[%c0_8, %c0_9, %c0_10], %16 {strides = array<i32>} : memref<1x4x256xf32, #tpu.memory_space<vmem>>, vector<1x4x256xf32>,
    %17 = arith.extui %7 : vector<1x256xi1> to vector<1x256xi32>
    %c0_11 = arith.constant 0 : index
    %c0_12 = arith.constant 0 : index
    %c0_13 = arith.constant 0 : index
    %18 = vector.load %arg5[%c0_11, %c0_12, %c0_13] : memref<1x1x256xi32, #tpu.memory_space<vmem>>, vector<1x1x256xi32>
    %19 = vector.shape_cast %18 : vector<1x1x256xi32> to vector<1x256xi32>
    %20 = vector.shape_cast %17 : vector<1x256xi32> to vector<1x1x256xi32>
    tpu.vector_store %arg5[%c0_11, %c0_12, %c0_13], %20 {strides = array<i32>} : memref<1x1x256xi32, #tpu.memory_space<vmem>>, vector<1x1x256xi32>,
    return
  }
  func.func @transform_0(%arg0: i32, %arg1: i32, %arg2: memref<1xf32, #tpu.memory_space<smem>>) -> (i32, i32, i32) {
    %c0_i32 = arith.constant 0 : i32
    %c0_i32_0 = arith.constant 0 : i32
    return %arg0, %c0_i32, %arg1 : i32, i32, i32
  }
  func.func @transform_1(%arg0: i32, %arg1: i32, %arg2: memref<1xf32, #tpu.memory_space<smem>>) -> (i32, i32, i32) {
    %c0_i32 = arith.constant 0 : i32
    %c0_i32_0 = arith.constant 0 : i32
    return %arg0, %c0_i32, %arg1 : i32, i32, i32
  }
  func.func @transform_2(%arg0: i32, %arg1: i32, %arg2: memref<1xf32, #tpu.memory_space<smem>>) -> (i32, i32, i32) {
    %c0_i32 = arith.constant 0 : i32
    %c0_i32_0 = arith.constant 0 : i32
    return %arg0, %c0_i32, %arg1 : i32, i32, i32
  }
}

module attributes {stable_mosaic.version = 11 : i64} {
  func.func @kernel(%arg0: i32, %arg1: i32, %arg2: memref<1xf32, #tpu.memory_space<smem>>, %arg3: memref<1x4x64xf32, #tpu.memory_space<vmem>>, %arg4: memref<1x4x64xf32, #tpu.memory_space<vmem>>, %arg5: memref<1x1x64xi32, #tpu.memory_space<vmem>>) attributes {dimension_semantics = [#tpu.dimension_semantics<parallel>, #tpu.dimension_semantics<parallel>], iteration_bounds = array<i64: 3, 1>, scalar_prefetch = 1 : i64, scratch_operands = 0 : i64, tpu.core_type = #tpu.core_type<tc>, window_params = [{transform_indices = @transform_0, window_bounds = array<i64: 1, 4, 64>}, {transform_indices = @transform_1, window_bounds = array<i64: 1, 4, 64>}, {transform_indices = @transform_2, window_bounds = array<i64: 1, 1, 64>}]} {
    %c0 = arith.constant 0 : index
    %0 = memref.load %arg2[%c0] : memref<1xf32, #tpu.memory_space<smem>>
    %c0_0 = arith.constant 0 : index
    %c0_1 = arith.constant 0 : index
    %c0_2 = arith.constant 0 : index
    %1 = vector.load %arg3[%c0_0, %c0_1, %c0_2] : memref<1x4x64xf32, #tpu.memory_space<vmem>>, vector<1x1x64xf32>
    %2 = vector.shape_cast %1 : vector<1x1x64xf32> to vector<1x64xf32>
    %c0_3 = arith.constant 0 : index
    %c1 = arith.constant 1 : index
    %c0_4 = arith.constant 0 : index
    %3 = vector.load %arg3[%c0_3, %c1, %c0_4] : memref<1x4x64xf32, #tpu.memory_space<vmem>>, vector<1x1x64xf32>
    %4 = vector.shape_cast %3 : vector<1x1x64xf32> to vector<1x64xf32>
    %5 = arith.maximumf %2, %4 : vector<1x64xf32>
    %6 = vector.broadcast %0 : f32 to vector<1x64xf32>
    %7 = arith.cmpf oge, %5, %6 : vector<1x64xf32>
    %c0_5 = arith.constant 0 : index
    %c0_6 = arith.constant 0 : index
    %c0_7 = arith.constant 0 : index
    %8 = vector.load %arg3[%c0_5, %c0_6, %c0_7] : memref<1x4x64xf32, #tpu.memory_space<vmem>>, vector<1x4x64xf32>
    %9 = vector.shape_cast %8 : vector<1x4x64xf32> to vector<4x64xf32>
    %cst = arith.constant 0.000000e+00 : f32
    %10 = vector.shape_cast %7 : vector<1x64xi1> to vector<1x64xi1>
    %11 = vector.broadcast %10 : vector<1x64xi1> to vector<4x64xi1>
    %12 = vector.broadcast %cst : f32 to vector<4x64xf32>
    %13 = arith.select %11, %9, %12 : vector<4x64xi1>, vector<4x64xf32>
    %c0_8 = arith.constant 0 : index
    %c0_9 = arith.constant 0 : index
    %c0_10 = arith.constant 0 : index
    %14 = vector.load %arg4[%c0_8, %c0_9, %c0_10] : memref<1x4x64xf32, #tpu.memory_space<vmem>>, vector<1x4x64xf32>
    %15 = vector.shape_cast %14 : vector<1x4x64xf32> to vector<4x64xf32>
    %16 = vector.shape_cast %13 : vector<4x64xf32> to vector<1x4x64xf32>
    tpu.vector_store %arg4[%c0_8, %c0_9, %c0_10], %16 {strides = array<i32>} : memref<1x4x64xf32, #tpu.memory_space<vmem>>, vector<1x4x64xf32>,
    %17 = arith.extui %7 : vector<1x64xi1> to vector<1x64xi32>
    %c0_11 = arith.constant 0 : index
    %c0_12 = arith.constant 0 : index
    %c0_13 = arith.constant 0 : index
    %18 = vector.load %arg5[%c0_11, %c0_12, %c0_13] : memref<1x1x64xi32, #tpu.memory_space<vmem>>, vector<1x1x64xi32>
    %19 = vector.shape_cast %18 : vector<1x1x64xi32> to vector<1x64xi32>
    %20 = vector.shape_cast %17 : vector<1x64xi32> to vector<1x1x64xi32>
    tpu.vector_store %arg5[%c0_11, %c0_12, %c0_13], %20 {strides = array<i32>} : memref<1x1x64xi32, #tpu.memory_space<vmem>>, vector<1x1x64xi32>,
    return
  }
  func.func @transform_0(%arg0: i32, %arg1: i32, %arg2: memref<1xf32, #tpu.memory_space<smem>>) -> (i32, i32, i32) {
    %c0_i32 = arith.constant 0 : i32
    %c0_i32_0 = arith.constant 0 : i32
    return %arg0, %c0_i32, %arg1 : i32, i32, i32
  }
  func.func @transform_1(%arg0: i32, %arg1: i32, %arg2: memref<1xf32, #tpu.memory_space<smem>>) -> (i32, i32, i32) {
    %c0_i32 = arith.constant 0 : i32
    %c0_i32_0 = arith.constant 0 : i32
    return %arg0, %c0_i32, %arg1 : i32, i32, i32
  }
  func.func @transform_2(%arg0: i32, %arg1: i32, %arg2: memref<1xf32, #tpu.memory_space<smem>>) -> (i32, i32, i32) {
    %c0_i32 = arith.constant 0 : i32
    %c0_i32_0 = arith.constant 0 : i32
    return %arg0, %c0_i32, %arg1 : i32, i32, i32
  }
}

module attributes {stable_mosaic.version = 11 : i64} {
  func.func @kernel(%arg0: i32, %arg1: i32, %arg2: memref<1xf32, #tpu.memory_space<smem>>, %arg3: memref<1x4x16xf32, #tpu.memory_space<vmem>>, %arg4: memref<1x4x16xf32, #tpu.memory_space<vmem>>, %arg5: memref<1x1x16xi32, #tpu.memory_space<vmem>>) attributes {dimension_semantics = [#tpu.dimension_semantics<parallel>, #tpu.dimension_semantics<parallel>], iteration_bounds = array<i64: 3, 1>, scalar_prefetch = 1 : i64, scratch_operands = 0 : i64, tpu.core_type = #tpu.core_type<tc>, window_params = [{transform_indices = @transform_0, window_bounds = array<i64: 1, 4, 16>}, {transform_indices = @transform_1, window_bounds = array<i64: 1, 4, 16>}, {transform_indices = @transform_2, window_bounds = array<i64: 1, 1, 16>}]} {
    %c0 = arith.constant 0 : index
    %0 = memref.load %arg2[%c0] : memref<1xf32, #tpu.memory_space<smem>>
    %c0_0 = arith.constant 0 : index
    %c0_1 = arith.constant 0 : index
    %c0_2 = arith.constant 0 : index
    %1 = vector.load %arg3[%c0_0, %c0_1, %c0_2] : memref<1x4x16xf32, #tpu.memory_space<vmem>>, vector<1x1x16xf32>
    %2 = vector.shape_cast %1 : vector<1x1x16xf32> to vector<1x16xf32>
    %c0_3 = arith.constant 0 : index
    %c1 = arith.constant 1 : index
    %c0_4 = arith.constant 0 : index
    %3 = vector.load %arg3[%c0_3, %c1, %c0_4] : memref<1x4x16xf32, #tpu.memory_space<vmem>>, vector<1x1x16xf32>
    %4 = vector.shape_cast %3 : vector<1x1x16xf32> to vector<1x16xf32>
    %5 = arith.maximumf %2, %4 : vector<1x16xf32>
    %6 = vector.broadcast %0 : f32 to vector<1x16xf32>
    %7 = arith.cmpf oge, %5, %6 : vector<1x16xf32>
    %c0_5 = arith.constant 0 : index
    %c0_6 = arith.constant 0 : index
    %c0_7 = arith.constant 0 : index
    %8 = vector.load %arg3[%c0_5, %c0_6, %c0_7] : memref<1x4x16xf32, #tpu.memory_space<vmem>>, vector<1x4x16xf32>
    %9 = vector.shape_cast %8 : vector<1x4x16xf32> to vector<4x16xf32>
    %cst = arith.constant 0.000000e+00 : f32
    %10 = vector.shape_cast %7 : vector<1x16xi1> to vector<1x16xi1>
    %11 = vector.broadcast %10 : vector<1x16xi1> to vector<4x16xi1>
    %12 = vector.broadcast %cst : f32 to vector<4x16xf32>
    %13 = arith.select %11, %9, %12 : vector<4x16xi1>, vector<4x16xf32>
    %c0_8 = arith.constant 0 : index
    %c0_9 = arith.constant 0 : index
    %c0_10 = arith.constant 0 : index
    %14 = vector.load %arg4[%c0_8, %c0_9, %c0_10] : memref<1x4x16xf32, #tpu.memory_space<vmem>>, vector<1x4x16xf32>
    %15 = vector.shape_cast %14 : vector<1x4x16xf32> to vector<4x16xf32>
    %16 = vector.shape_cast %13 : vector<4x16xf32> to vector<1x4x16xf32>
    tpu.vector_store %arg4[%c0_8, %c0_9, %c0_10], %16 {strides = array<i32>} : memref<1x4x16xf32, #tpu.memory_space<vmem>>, vector<1x4x16xf32>,
    %17 = arith.extui %7 : vector<1x16xi1> to vector<1x16xi32>
    %c0_11 = arith.constant 0 : index
    %c0_12 = arith.constant 0 : index
    %c0_13 = arith.constant 0 : index
    %18 = vector.load %arg5[%c0_11, %c0_12, %c0_13] : memref<1x1x16xi32, #tpu.memory_space<vmem>>, vector<1x1x16xi32>
    %19 = vector.shape_cast %18 : vector<1x1x16xi32> to vector<1x16xi32>
    %20 = vector.shape_cast %17 : vector<1x16xi32> to vector<1x1x16xi32>
    tpu.vector_store %arg5[%c0_11, %c0_12, %c0_13], %20 {strides = array<i32>} : memref<1x1x16xi32, #tpu.memory_space<vmem>>, vector<1x1x16xi32>,
    return
  }
  func.func @transform_0(%arg0: i32, %arg1: i32, %arg2: memref<1xf32, #tpu.memory_space<smem>>) -> (i32, i32, i32) {
    %c0_i32 = arith.constant 0 : i32
    %c0_i32_0 = arith.constant 0 : i32
    return %arg0, %c0_i32, %arg1 : i32, i32, i32
  }
  func.func @transform_1(%arg0: i32, %arg1: i32, %arg2: memref<1xf32, #tpu.memory_space<smem>>) -> (i32, i32, i32) {
    %c0_i32 = arith.constant 0 : i32
    %c0_i32_0 = arith.constant 0 : i32
    return %arg0, %c0_i32, %arg1 : i32, i32, i32
  }
  func.func @transform_2(%arg0: i32, %arg1: i32, %arg2: memref<1xf32, #tpu.memory_space<smem>>) -> (i32, i32, i32) {
    %c0_i32 = arith.constant 0 : i32
    %c0_i32_0 = arith.constant 0 : i32
    return %arg0, %c0_i32, %arg1 : i32, i32, i32
  }
}

</mosaic_0001>

<llo_original>
// kernel: squeeze.30
$region0: #{squeeze.30}
  %s0 = inlined_call_operand.vmem [shape: f32[1,12,16,16], index: 0, kind: input, shape index: {}]
  %s1 = inlined_call_operand.vmem [shape: f32[3,4,256], index: 1, kind: output, shape index: {}]
  $region1: #{squeeze.30} parent=0
    #allocation0 [shape = 'u8[24576]{0}', space=vmem, size = 0x6000, scoped, tag = 'scoped mem for output reshape']
    %v2 = vld [vmem:[%s0] ss:$8 sm:$0xf]
    %v3 = vld [vmem:[%s0] ss:$8 sm:$0xf0]
    %vm4 = vcmask 1047556
    %v5 = vsel %vm4, %v3, %v2
    %vm6 = vcmask 130048
    %7 = vst.msk [vmem:[#allocation0] ss:$8 sm:$0x3] %vm6, %v5
    %s8 = scalar_lea.vmem [#allocation0], 4294967281
    %9 = vst.msk [vmem:[%s8] ss:$8 sm:$0xc] %vm6, %v5
    %s10 = scalar_lea.vmem [#allocation0], 4294967266
    %11 = vst.msk [vmem:[%s10] ss:$8 sm:$0x30] %vm6, %v5
    %s12 = scalar_lea.vmem [#allocation0], 4294967251
    %13 = vst.msk [vmem:[%s12] ss:$8 sm:$0xc0] %vm6, %v5
    %s14 = scalar_lea.vmem %s0, 64
    %v15 = vld [vmem:[%s14] ss:$8 sm:$0xf]
    %s16 = scalar_lea.vmem %s0, 64
    %v17 = vld [vmem:[%s16] ss:$8 sm:$0xf0]
    %vm18 = vcmask 1047556
    %v19 = vsel %vm18, %v17, %v15
    %vm20 = vcmask 130048
    %s21 = scalar_lea.vmem [#allocation0], 16
    %22 = vst.msk [vmem:[%s21] ss:$8 sm:$0x3] %vm20, %v19
    %s23 = scalar_lea.vmem [#allocation0], 1
    %24 = vst.msk [vmem:[%s23] ss:$8 sm:$0xc] %vm20, %v19
    %s25 = scalar_lea.vmem [#allocation0], 4294967282
    %26 = vst.msk [vmem:[%s25] ss:$8 sm:$0x30] %vm20, %v19
    %s27 = scalar_lea.vmem [#allocation0], 4294967267
    %28 = vst.msk [vmem:[%s27] ss:$8 sm:$0xc0] %vm20, %v19
    %s29 = scalar_lea.vmem %s0, 128
    %v30 = vld [vmem:[%s29] ss:$8 sm:$0xf]
    %s31 = scalar_lea.vmem %s0, 128
    %v32 = vld [vmem:[%s31] ss:$8 sm:$0xf0]
    %vm33 = vcmask 1047556
    %v34 = vsel %vm33, %v32, %v30
    %vm35 = vcmask 130048
    %s36 = scalar_lea.vmem [#allocation0], 32
    %37 = vst.msk [vmem:[%s36] ss:$8 sm:$0x3] %vm35, %v34
    %s38 = scalar_lea.vmem [#allocation0], 17
    %39 = vst.msk [vmem:[%s38] ss:$8 sm:$0xc] %vm35, %v34
    %s40 = scalar_lea.vmem [#allocation0], 2
    %41 = vst.msk [vmem:[%s40] ss:$8 sm:$0x30] %vm35, %v34
    %s42 = scalar_lea.vmem [#allocation0], 4294967283
    %43 = vst.msk [vmem:[%s42] ss:$8 sm:$0xc0] %vm35, %v34
    %s44 = scalar_lea.vmem %s0, 7
    %s45 = smov 3
    %v46 = vld [vmem:[%s44] ss:$16 sm:%s45]
    %s47 = scalar_lea.vmem %s0, 7
    %s48 = smov 12
    %v49 = vld [vmem:[%s47] ss:$16 sm:%s48]
    %vm50 = vcmask 1043458
    %v51 = vsel %vm50, %v49, %v46
    %s52 = scalar_lea.vmem %s0, 4294967247
    %s53 = smov 48
    %v54 = vld [vmem:[%s52] ss:$16 sm:%s53]
    %vm55 = vcmask 1045508
    %v56 = vsel %vm55, %v54, %v51
    %s57 = scalar_lea.vmem %s0, 4294967247
    %s58 = smov 192
    %v59 = vld [vmem:[%s57] ss:$16 sm:%s58]
    %vm60 = vcmask 1047558
    %v61 = vsel %vm60, %v59, %v56
    %62 = vrot.lane.b32.xlu0 %v61, 112
    %v63 = vpop.permute.xlu0 %62
    %vm64 = vcmask 1048448
    %65 = vst.msk [vmem:[#allocation0] sm:$0xf] %vm64, %v63
    %s66 = scalar_lea.vmem [#allocation0], 4
    %67 = vst.msk [vmem:[%s66] sm:$0xf0] %vm64, %v63
    %s68 = scalar_lea.vmem %s0, 135
    %s69 = smov 3
    %v70 = vld [vmem:[%s68] ss:$16 sm:%s69]
    %s71 = scalar_lea.vmem %s0, 135
    %s72 = smov 12
    %v73 = vld [vmem:[%s71] ss:$16 sm:%s72]
    %vm74 = vcmask 1043458
    %v75 = vsel %vm74, %v73, %v70
    %s76 = scalar_lea.vmem %s0, 79
    %s77 = smov 48
    %v78 = vld [vmem:[%s76] ss:$16 sm:%s77]
    %vm79 = vcmask 1045508
    %v80 = vsel %vm79, %v78, %v75
    %s81 = scalar_lea.vmem %s0, 79
    %s82 = smov 192
    %v83 = vld [vmem:[%s81] ss:$16 sm:%s82]
    %vm84 = vcmask 1047558
    %v85 = vsel %vm84, %v83, %v80
    %86 = vrot.lane.b32.xlu0 %v85, 112
    %v87 = vpop.permute.xlu0 %86
    %vm88 = vcmask 1048448
    %s89 = scalar_lea.vmem [#allocation0], 32
    %90 = vst.msk [vmem:[%s89] sm:$0xf] %vm88, %v87
    %s91 = scalar_lea.vmem [#allocation0], 36
    %92 = vst.msk [vmem:[%s91] sm:$0xf0] %vm88, %v87
    %s93 = scalar_lea.vmem %s0, 71
    %s94 = smov 3
    %v95 = vld [vmem:[%s93] ss:$16 sm:%s94]
    %s96 = scalar_lea.vmem %s0, 71
    %s97 = smov 12
    %v98 = vld [vmem:[%s96] ss:$16 sm:%s97]
    %vm99 = vcmask 1043458
    %v100 = vsel %vm99, %v98, %v95
    %s101 = scalar_lea.vmem %s0, 15
    %s102 = smov 48
    %v103 = vld [vmem:[%s101] ss:$16 sm:%s102]
    %vm104 = vcmask 1045508
    %v105 = vsel %vm104, %v103, %v100
    %s106 = scalar_lea.vmem %s0, 15
    %s107 = smov 192
    %v108 = vld [vmem:[%s106] ss:$16 sm:%s107]
    %vm109 = vcmask 1047558
    %v110 = vsel %vm109, %v108, %v105
    %111 = vrot.lane.b32.xlu0 %v110, 112
    %v112 = vpop.permute.xlu0 %111
    %vm113 = vcmask 1048448
    %s114 = scalar_lea.vmem [#allocation0], 16
    %115 = vst.msk [vmem:[%s114] sm:$0xf] %vm113, %v112
    %s116 = scalar_lea.vmem [#allocation0], 20
    %117 = vst.msk [vmem:[%s116] sm:$0xf0] %vm113, %v112
    %s118 = scalar_lea.vmem %s0, 6
    %s119 = smov 3
    %v120 = vld [vmem:[%s118] ss:$16 sm:%s119]
    %s121 = scalar_lea.vmem %s0, 6
    %s122 = smov 12
    %v123 = vld [vmem:[%s121] ss:$16 sm:%s122]
    %vm124 = vcmask 1043458
    %v125 = vsel %vm124, %v123, %v120
    %s126 = scalar_lea.vmem %s0, 4294967246
    %s127 = smov 48
    %v128 = vld [vmem:[%s126] ss:$16 sm:%s127]
    %vm129 = vcmask 1045508
    %v130 = vsel %vm129, %v128, %v125
    %s131 = scalar_lea.vmem %s0, 4294967246
    %s132 = smov 192
    %v133 = vld [vmem:[%s131] ss:$16 sm:%s132]
    %vm134 = vcmask 1047558
    %v135 = vsel %vm134, %v133, %v130
    %136 = vrot.lane.b32.xlu0 %v135, 96
    %v137 = vpop.permute.xlu0 %136
    %vm138 = vcmask 917248
    %139 = vst.msk [vmem:[#allocation0] sm:$0xf] %vm138, %v137
    %s140 = scalar_lea.vmem [#allocation0], 4
    %141 = vst.msk [vmem:[%s140] sm:$0xf0] %vm138, %v137
    %s142 = scalar_lea.vmem %s0, 134
    %s143 = smov 3
    %v144 = vld [vmem:[%s142] ss:$16 sm:%s143]
    %s145 = scalar_lea.vmem %s0, 134
    %s146 = smov 12
    %v147 = vld [vmem:[%s145] ss:$16 sm:%s146]
    %vm148 = vcmask 1043458
    %v149 = vsel %vm148, %v147, %v144
    %s150 = scalar_lea.vmem %s0, 78
    %s151 = smov 48
    %v152 = vld [vmem:[%s150] ss:$16 sm:%s151]
    %vm153 = vcmask 1045508
    %v154 = vsel %vm153, %v152, %v149
    %s155 = scalar_lea.vmem %s0, 78
    %s156 = smov 192
    %v157 = vld [vmem:[%s155] ss:$16 sm:%s156]
    %vm158 = vcmask 1047558
    %v159 = vsel %vm158, %v157, %v154
    %160 = vrot.lane.b32.xlu0 %v159, 96
    %v161 = vpop.permute.xlu0 %160
    %vm162 = vcmask 917248
    %s163 = scalar_lea.vmem [#allocation0], 32
    %164 = vst.msk [vmem:[%s163] sm:$0xf] %vm162, %v161
    %s165 = scalar_lea.vmem [#allocation0], 36
    %166 = vst.msk [vmem:[%s165] sm:$0xf0] %vm162, %v161
    %s167 = scalar_lea.vmem %s0, 70
    %s168 = smov 3
    %v169 = vld [vmem:[%s167] ss:$16 sm:%s168]
    %s170 = scalar_lea.vmem %s0, 70
    %s171 = smov 12
    %v172 = vld [vmem:[%s170] ss:$16 sm:%s171]
    %vm173 = vcmask 1043458
    %v174 = vsel %vm173, %v172, %v169
    %s175 = scalar_lea.vmem %s0, 14
    %s176 = smov 48
    %v177 = vld [vmem:[%s175] ss:$16 sm:%s176]
    %vm178 = vcmask 1045508
    %v179 = vsel %vm178, %v177, %v174
    %s180 = scalar_lea.vmem %s0, 14
    %s181 = smov 192
    %v182 = vld [vmem:[%s180] ss:$16 sm:%s181]
    %vm183 = vcmask 1047558
    %v184 = vsel %vm183, %v182, %v179
    %185 = vrot.lane.b32.xlu0 %v184, 96
    %v186 = vpop.permute.xlu0 %185
    %vm187 = vcmask 917248
    %s188 = scalar_lea.vmem [#allocation0], 16
    %189 = vst.msk [vmem:[%s188] sm:$0xf] %vm187, %v186
    %s190 = scalar_lea.vmem [#allocation0], 20
    %191 = vst.msk [vmem:[%s190] sm:$0xf0] %vm187, %v186
    %s192 = scalar_lea.vmem %s0, 5
    %s193 = smov 3
    %v194 = vld [vmem:[%s192] ss:$16 sm:%s193]
    %s195 = scalar_lea.vmem %s0, 5
    %s196 = smov 12
    %v197 = vld [vmem:[%s195] ss:$16 sm:%s196]
    %vm198 = vcmask 1043458
    %v199 = vsel %vm198, %v197, %v194
    %s200 = scalar_lea.vmem %s0, 4294967245
    %s201 = smov 48
    %v202 = vld [vmem:[%s200] ss:$16 sm:%s201]
    %vm203 = vcmask 1045508
    %v204 = vsel %vm203, %v202, %v199
    %s205 = scalar_lea.vmem %s0, 4294967245
    %s206 = smov 192
    %v207 = vld [vmem:[%s205] ss:$16 sm:%s206]
    %vm208 = vcmask 1047558
    %v209 = vsel %vm208, %v207, %v204
    %210 = vrot.lane.b32.xlu0 %v209, 80
    %v211 = vpop.permute.xlu0 %210
    %vm212 = vcmask 786048
    %213 = vst.msk [vmem:[#allocation0] sm:$0xf] %vm212, %v211
    %s214 = scalar_lea.vmem [#allocation0], 4
    %215 = vst.msk [vmem:[%s214] sm:$0xf0] %vm212, %v211
    %s216 = scalar_lea.vmem %s0, 133
    %s217 = smov 3
    %v218 = vld [vmem:[%s216] ss:$16 sm:%s217]
    %s219 = scalar_lea.vmem %s0, 133
    %s220 = smov 12
    %v221 = vld [vmem:[%s219] ss:$16 sm:%s220]
    %vm222 = vcmask 1043458
    %v223 = vsel %vm222, %v221, %v218
    %s224 = scalar_lea.vmem %s0, 77
    %s225 = smov 48
    %v226 = vld [vmem:[%s224] ss:$16 sm:%s225]
    %vm227 = vcmask 1045508
    %v228 = vsel %vm227, %v226, %v223
    %s229 = scalar_lea.vmem %s0, 77
    %s230 = smov 192
    %v231 = vld [vmem:[%s229] ss:$16 sm:%s230]
    %vm232 = vcmask 1047558
    %v233 = vsel %vm232, %v231, %v228
    %234 = vrot.lane.b32.xlu0 %v233, 80
    %v235 = vpop.permute.xlu0 %234
    %vm236 = vcmask 786048
    %s237 = scalar_lea.vmem [#allocation0], 32
    %238 = vst.msk [vmem:[%s237] sm:$0xf] %vm236, %v235
    %s239 = scalar_lea.vmem [#allocation0], 36
    %240 = vst.msk [vmem:[%s239] sm:$0xf0] %vm236, %v235
    %s241 = scalar_lea.vmem %s0, 69
    %s242 = smov 3
    %v243 = vld [vmem:[%s241] ss:$16 sm:%s242]
    %s244 = scalar_lea.vmem %s0, 69
    %s245 = smov 12
    %v246 = vld [vmem:[%s244] ss:$16 sm:%s245]
    %vm247 = vcmask 1043458
    %v248 = vsel %vm247, %v246, %v243
    %s249 = scalar_lea.vmem %s0, 13
    %s250 = smov 48
    %v251 = vld [vmem:[%s249] ss:$16 sm:%s250]
    %vm252 = vcmask 1045508
    %v253 = vsel %vm252, %v251, %v248
    %s254 = scalar_lea.vmem %s0, 13
    %s255 = smov 192
    %v256 = vld [vmem:[%s254] ss:$16 sm:%s255]
    %vm257 = vcmask 1047558
    %v258 = vsel %vm257, %v256, %v253
    %259 = vrot.lane.b32.xlu0 %v258, 80
    %v260 = vpop.permute.xlu0 %259
    %vm261 = vcmask 786048
    %s262 = scalar_lea.vmem [#allocation0], 16
    %263 = vst.msk [vmem:[%s262] sm:$0xf] %vm261, %v260
    %s264 = scalar_lea.vmem [#allocation0], 20
    %265 = vst.msk [vmem:[%s264] sm:$0xf0] %vm261, %v260
    %s266 = scalar_lea.vmem %s0, 4
    %s267 = smov 3
    %v268 = vld [vmem:[%s266] ss:$16 sm:%s267]
    %s269 = scalar_lea.vmem %s0, 4
    %s270 = smov 12
    %v271 = vld [vmem:[%s269] ss:$16 sm:%s270]
    %vm272 = vcmask 1043458
    %v273 = vsel %vm272, %v271, %v268
    %s274 = scalar_lea.vmem %s0, 4294967244
    %s275 = smov 48
    %v276 = vld [vmem:[%s274] ss:$16 sm:%s275]
    %vm277 = vcmask 1045508
    %v278 = vsel %vm277, %v276, %v273
    %s279 = scalar_lea.vmem %s0, 4294967244
    %s280 = smov 192
    %v281 = vld [vmem:[%s279] ss:$16 sm:%s280]
    %vm282 = vcmask 1047558
    %v283 = vsel %vm282, %v281, %v278
    %284 = vrot.lane.b32.xlu0 %v283, 64
    %v285 = vpop.permute.xlu0 %284
    %vm286 = vcmask 654848
    %287 = vst.msk [vmem:[#allocation0] sm:$0xf] %vm286, %v285
    %s288 = scalar_lea.vmem [#allocation0], 4
    %289 = vst.msk [vmem:[%s288] sm:$0xf0] %vm286, %v285
    %s290 = scalar_lea.vmem %s0, 132
    %s291 = smov 3
    %v292 = vld [vmem:[%s290] ss:$16 sm:%s291]
    %s293 = scalar_lea.vmem %s0, 132
    %s294 = smov 12
    %v295 = vld [vmem:[%s293] ss:$16 sm:%s294]
    %vm296 = vcmask 1043458
    %v297 = vsel %vm296, %v295, %v292
    %s298 = scalar_lea.vmem %s0, 76
    %s299 = smov 48
    %v300 = vld [vmem:[%s298] ss:$16 sm:%s299]
    %vm301 = vcmask 1045508
    %v302 = vsel %vm301, %v300, %v297
    %s303 = scalar_lea.vmem %s0, 76
    %s304 = smov 192
    %v305 = vld [vmem:[%s303] ss:$16 sm:%s304]
    %vm306 = vcmask 1047558
    %v307 = vsel %vm306, %v305, %v302
    %308 = vrot.lane.b32.xlu0 %v307, 64
    %v309 = vpop.permute.xlu0 %308
    %vm310 = vcmask 654848
    %s311 = scalar_lea.vmem [#allocation0], 32
    %312 = vst.msk [vmem:[%s311] sm:$0xf] %vm310, %v309
    %s313 = scalar_lea.vmem [#allocation0], 36
    %314 = vst.msk [vmem:[%s313] sm:$0xf0] %vm310, %v309
    %s315 = scalar_lea.vmem %s0, 68
    %s316 = smov 3
    %v317 = vld [vmem:[%s315] ss:$16 sm:%s316]
    %s318 = scalar_lea.vmem %s0, 68
    %s319 = smov 12
    %v320 = vld [vmem:[%s318] ss:$16 sm:%s319]
    %vm321 = vcmask 1043458
    %v322 = vsel %vm321, %v320, %v317
    %s323 = scalar_lea.vmem %s0, 12
    %s324 = smov 48
    %v325 = vld [vmem:[%s323] ss:$16 sm:%s324]
    %vm326 = vcmask 1045508
    %v327 = vsel %vm326, %v325, %v322
    %s328 = scalar_lea.vmem %s0, 12
    %s329 = smov 192
    %v330 = vld [vmem:[%s328] ss:$16 sm:%s329]
    %vm331 = vcmask 1047558
    %v332 = vsel %vm331, %v330, %v327
    %333 = vrot.lane.b32.xlu0 %v332, 64
    %v334 = vpop.permute.xlu0 %333
    %vm335 = vcmask 654848
    %s336 = scalar_lea.vmem [#allocation0], 16
    %337 = vst.msk [vmem:[%s336] sm:$0xf] %vm335, %v334
    %s338 = scalar_lea.vmem [#allocation0], 20
    %339 = vst.msk [vmem:[%s338] sm:$0xf0] %vm335, %v334
    %s340 = scalar_lea.vmem %s0, 3
    %s341 = smov 3
    %v342 = vld [vmem:[%s340] ss:$16 sm:%s341]
    %s343 = scalar_lea.vmem %s0, 3
    %s344 = smov 12
    %v345 = vld [vmem:[%s343] ss:$16 sm:%s344]
    %vm346 = vcmask 1043458
    %v347 = vsel %vm346, %v345, %v342
    %s348 = scalar_lea.vmem %s0, 4294967243
    %s349 = smov 48
    %v350 = vld [vmem:[%s348] ss:$16 sm:%s349]
    %vm351 = vcmask 1045508
    %v352 = vsel %vm351, %v350, %v347
    %s353 = scalar_lea.vmem %s0, 4294967243
    %s354 = smov 192
    %v355 = vld [vmem:[%s353] ss:$16 sm:%s354]
    %vm356 = vcmask 1047558
    %v357 = vsel %vm356, %v355, %v352
    %358 = vrot.lane.b32.xlu0 %v357, 48
    %v359 = vpop.permute.xlu0 %358
    %vm360 = vcmask 523648
    %361 = vst.msk [vmem:[#allocation0] sm:$0xf] %vm360, %v359
    %s362 = scalar_lea.vmem [#allocation0], 4
    %363 = vst.msk [vmem:[%s362] sm:$0xf0] %vm360, %v359
    %s364 = scalar_lea.vmem %s0, 131
    %s365 = smov 3
    %v366 = vld [vmem:[%s364] ss:$16 sm:%s365]
    %s367 = scalar_lea.vmem %s0, 131
    %s368 = smov 12
    %v369 = vld [vmem:[%s367] ss:$16 sm:%s368]
    %vm370 = vcmask 1043458
    %v371 = vsel %vm370, %v369, %v366
    %s372 = scalar_lea.vmem %s0, 75
    %s373 = smov 48
    %v374 = vld [vmem:[%s372] ss:$16 sm:%s373]
    %vm375 = vcmask 1045508
    %v376 = vsel %vm375, %v374, %v371
    %s377 = scalar_lea.vmem %s0, 75
    %s378 = smov 192
    %v379 = vld [vmem:[%s377] ss:$16 sm:%s378]
    %vm380 = vcmask 1047558
    %v381 = vsel %vm380, %v379, %v376
    %382 = vrot.lane.b32.xlu0 %v381, 48
    %v383 = vpop.permute.xlu0 %382
    %vm384 = vcmask 523648
    %s385 = scalar_lea.vmem [#allocation0], 32
    %386 = vst.msk [vmem:[%s385] sm:$0xf] %vm384, %v383
    %s387 = scalar_lea.vmem [#allocation0], 36
    %388 = vst.msk [vmem:[%s387] sm:$0xf0] %vm384, %v383
    %s389 = scalar_lea.vmem %s0, 67
    %s390 = smov 3
    %v391 = vld [vmem:[%s389] ss:$16 sm:%s390]
    %s392 = scalar_lea.vmem %s0, 67
    %s393 = smov 12
    %v394 = vld [vmem:[%s392] ss:$16 sm:%s393]
    %vm395 = vcmask 1043458
    %v396 = vsel %vm395, %v394, %v391
    %s397 = scalar_lea.vmem %s0, 11
    %s398 = smov 48
    %v399 = vld [vmem:[%s397] ss:$16 sm:%s398]
    %vm400 = vcmask 1045508
    %v401 = vsel %vm400, %v399, %v396
    %s402 = scalar_lea.vmem %s0, 11
    %s403 = smov 192
    %v404 = vld [vmem:[%s402] ss:$16 sm:%s403]
    %vm405 = vcmask 1047558
    %v406 = vsel %vm405, %v404, %v401
    %407 = vrot.lane.b32.xlu0 %v406, 48
    %v408 = vpop.permute.xlu0 %407
    %vm409 = vcmask 523648
    %s410 = scalar_lea.vmem [#allocation0], 16
    %411 = vst.msk [vmem:[%s410] sm:$0xf] %vm409, %v408
    %s412 = scalar_lea.vmem [#allocation0], 20
    %413 = vst.msk [vmem:[%s412] sm:$0xf0] %vm409, %v408
    %s414 = scalar_lea.vmem %s0, 2
    %s415 = smov 3
    %v416 = vld [vmem:[%s414] ss:$16 sm:%s415]
    %s417 = scalar_lea.vmem %s0, 2
    %s418 = smov 12
    %v419 = vld [vmem:[%s417] ss:$16 sm:%s418]
    %vm420 = vcmask 1043458
    %v421 = vsel %vm420, %v419, %v416
    %s422 = scalar_lea.vmem %s0, 4294967242
    %s423 = smov 48
    %v424 = vld [vmem:[%s422] ss:$16 sm:%s423]
    %vm425 = vcmask 1045508
    %v426 = vsel %vm425, %v424, %v421
    %s427 = scalar_lea.vmem %s0, 4294967242
    %s428 = smov 192
    %v429 = vld [vmem:[%s427] ss:$16 sm:%s428]
    %vm430 = vcmask 1047558
    %v431 = vsel %vm430, %v429, %v426
    %432 = vrot.lane.b32.xlu0 %v431, 32
    %v433 = vpop.permute.xlu0 %432
    %vm434 = vcmask 392448
    %435 = vst.msk [vmem:[#allocation0] sm:$0xf] %vm434, %v433
    %s436 = scalar_lea.vmem [#allocation0], 4
    %437 = vst.msk [vmem:[%s436] sm:$0xf0] %vm434, %v433
    %s438 = scalar_lea.vmem %s0, 130
    %s439 = smov 3
    %v440 = vld [vmem:[%s438] ss:$16 sm:%s439]
    %s441 = scalar_lea.vmem %s0, 130
    %s442 = smov 12
    %v443 = vld [vmem:[%s441] ss:$16 sm:%s442]
    %vm444 = vcmask 1043458
    %v445 = vsel %vm444, %v443, %v440
    %s446 = scalar_lea.vmem %s0, 74
    %s447 = smov 48
    %v448 = vld [vmem:[%s446] ss:$16 sm:%s447]
    %vm449 = vcmask 1045508
    %v450 = vsel %vm449, %v448, %v445
    %s451 = scalar_lea.vmem %s0, 74
    %s452 = smov 192
    %v453 = vld [vmem:[%s451] ss:$16 sm:%s452]
    %vm454 = vcmask 1047558
    %v455 = vsel %vm454, %v453, %v450
    %456 = vrot.lane.b32.xlu0 %v455, 32
    %v457 = vpop.permute.xlu0 %456
    %vm458 = vcmask 392448
    %s459 = scalar_lea.vmem [#allocation0], 32
    %460 = vst.msk [vmem:[%s459] sm:$0xf] %vm458, %v457
    %s461 = scalar_lea.vmem [#allocation0], 36
    %462 = vst.msk [vmem:[%s461] sm:$0xf0] %vm458, %v457
    %s463 = scalar_lea.vmem %s0, 66
    %s464 = smov 3
    %v465 = vld [vmem:[%s463] ss:$16 sm:%s464]
    %s466 = scalar_lea.vmem %s0, 66
    %s467 = smov 12
    %v468 = vld [vmem:[%s466] ss:$16 sm:%s467]
    %vm469 = vcmask 1043458
    %v470 = vsel %vm469, %v468, %v465
    %s471 = scalar_lea.vmem %s0, 10
    %s472 = smov 48
    %v473 = vld [vmem:[%s471] ss:$16 sm:%s472]
    %vm474 = vcmask 1045508
    %v475 = vsel %vm474, %v473, %v470
    %s476 = scalar_lea.vmem %s0, 10
    %s477 = smov 192
    %v478 = vld [vmem:[%s476] ss:$16 sm:%s477]
    %vm479 = vcmask 1047558
    %v480 = vsel %vm479, %v478, %v475
    %481 = vrot.lane.b32.xlu0 %v480, 32
    %v482 = vpop.permute.xlu0 %481
    %vm483 = vcmask 392448
    %s484 = scalar_lea.vmem [#allocation0], 16
    %485 = vst.msk [vmem:[%s484] sm:$0xf] %vm483, %v482
    %s486 = scalar_lea.vmem [#allocation0], 20
    %487 = vst.msk [vmem:[%s486] sm:$0xf0] %vm483, %v482
    %s488 = scalar_lea.vmem %s0, 1
    %s489 = smov 3
    %v490 = vld [vmem:[%s488] ss:$16 sm:%s489]
    %s491 = scalar_lea.vmem %s0, 1
    %s492 = smov 12
    %v493 = vld [vmem:[%s491] ss:$16 sm:%s492]
    %vm494 = vcmask 1043458
    %v495 = vsel %vm494, %v493, %v490
    %s496 = scalar_lea.vmem %s0, 4294967241
    %s497 = smov 48
    %v498 = vld [vmem:[%s496] ss:$16 sm:%s497]
    %vm499 = vcmask 1045508
    %v500 = vsel %vm499, %v498, %v495
    %s501 = scalar_lea.vmem %s0, 4294967241
    %s502 = smov 192
    %v503 = vld [vmem:[%s501] ss:$16 sm:%s502]
    %vm504 = vcmask 1047558
    %v505 = vsel %vm504, %v503, %v500
    %506 = vrot.lane.b32.xlu0 %v505, 16
    %v507 = vpop.permute.xlu0 %506
    %vm508 = vcmask 261248
    %509 = vst.msk [vmem:[#allocation0] sm:$0xf] %vm508, %v507
    %s510 = scalar_lea.vmem [#allocation0], 4
    %511 = vst.msk [vmem:[%s510] sm:$0xf0] %vm508, %v507
    %s512 = scalar_lea.vmem %s0, 129
    %s513 = smov 3
    %v514 = vld [vmem:[%s512] ss:$16 sm:%s513]
    %s515 = scalar_lea.vmem %s0, 129
    %s516 = smov 12
    %v517 = vld [vmem:[%s515] ss:$16 sm:%s516]
    %vm518 = vcmask 1043458
    %v519 = vsel %vm518, %v517, %v514
    %s520 = scalar_lea.vmem %s0, 73
    %s521 = smov 48
    %v522 = vld [vmem:[%s520] ss:$16 sm:%s521]
    %vm523 = vcmask 1045508
    %v524 = vsel %vm523, %v522, %v519
    %s525 = scalar_lea.vmem %s0, 73
    %s526 = smov 192
    %v527 = vld [vmem:[%s525] ss:$16 sm:%s526]
    %vm528 = vcmask 1047558
    %v529 = vsel %vm528, %v527, %v524
    %530 = vrot.lane.b32.xlu0 %v529, 16
    %v531 = vpop.permute.xlu0 %530
    %vm532 = vcmask 261248
    %s533 = scalar_lea.vmem [#allocation0], 32
    %534 = vst.msk [vmem:[%s533] sm:$0xf] %vm532, %v531
    %s535 = scalar_lea.vmem [#allocation0], 36
    %536 = vst.msk [vmem:[%s535] sm:$0xf0] %vm532, %v531
    %s537 = scalar_lea.vmem %s0, 65
    %s538 = smov 3
    %v539 = vld [vmem:[%s537] ss:$16 sm:%s538]
    %s540 = scalar_lea.vmem %s0, 65
    %s541 = smov 12
    %v542 = vld [vmem:[%s540] ss:$16 sm:%s541]
    %vm543 = vcmask 1043458
    %v544 = vsel %vm543, %v542, %v539
    %s545 = scalar_lea.vmem %s0, 9
    %s546 = smov 48
    %v547 = vld [vmem:[%s545] ss:$16 sm:%s546]
    %vm548 = vcmask 1045508
    %v549 = vsel %vm548, %v547, %v544
    %s550 = scalar_lea.vmem %s0, 9
    %s551 = smov 192
    %v552 = vld [vmem:[%s550] ss:$16 sm:%s551]
    %vm553 = vcmask 1047558
    %v554 = vsel %vm553, %v552, %v549
    %555 = vrot.lane.b32.xlu0 %v554, 16
    %v556 = vpop.permute.xlu0 %555
    %vm557 = vcmask 261248
    %s558 = scalar_lea.vmem [#allocation0], 16
    %559 = vst.msk [vmem:[%s558] sm:$0xf] %vm557, %v556
    %s560 = scalar_lea.vmem [#allocation0], 20
    %561 = vst.msk [vmem:[%s560] sm:$0xf0] %vm557, %v556
    %s563 = sshllo.u32 0, 4
    %v565 = vld [vmem:[#allocation0] sm:%s563]
    %s566 = sshllo.u32 0, 4
    %567 = vst [vmem:[%s1] sm:%s566] %v565
    %s568 = scalar_lea.vmem [#allocation0], 8
    %v569 = vld [vmem:[%s568] sm:%s563]
    %s570 = sshllo.u32 0, 4
    %s571 = scalar_lea.vmem %s1, 4
    %572 = vst [vmem:[%s571] sm:%s570] %v569
    %s573 = scalar_lea.vmem [#allocation0], 16
    %v574 = vld [vmem:[%s573] sm:%s563]
    %s575 = sshllo.u32 0, 4
    %s576 = smul.addr 4, 2
    %s577 = scalar_lea.vmem %s1, %s576
    %578 = vst [vmem:[%s577] sm:%s575] %v574
    %s579 = scalar_lea.vmem [#allocation0], 24
    %v580 = vld [vmem:[%s579] sm:%s563]
    %s581 = sshllo.u32 0, 4
    %s582 = smul.addr 4, 3
    %s583 = scalar_lea.vmem %s1, %s582
    %584 = vst [vmem:[%s583] sm:%s581] %v580
    %s585 = scalar_lea.vmem [#allocation0], 32
    %v586 = vld [vmem:[%s585] sm:%s563]
    %s587 = sshllo.u32 0, 4
    %s588 = smul.addr 4, 4
    %s589 = scalar_lea.vmem %s1, %s588
    %590 = vst [vmem:[%s589] sm:%s587] %v586
    %s591 = scalar_lea.vmem [#allocation0], 40
    %v592 = vld [vmem:[%s591] sm:%s563]
    %s593 = sshllo.u32 0, 4
    %s594 = smul.addr 4, 5
    %s595 = scalar_lea.vmem %s1, %s594
    %596 = vst [vmem:[%s595] sm:%s593] %v592

// kernel: squeeze.40
$region0: #{squeeze.40}
  %s0 = inlined_call_operand.vmem [shape: f32[1,12,8,8], index: 0, kind: input, shape index: {}]
  %s1 = inlined_call_operand.vmem [shape: f32[3,4,64], index: 1, kind: output, shape index: {}]
  $region1: #{squeeze.40} parent=0
    #allocation0 [shape = 'u8[12288]{0}', space=vmem, size = 0x3000, scoped, tag = 'scoped mem for output reshape']
    %v2 = vld [vmem:[%s0] ss:$8 sm:$0xf]
    %v3 = vld [vmem:[%s0] ss:$8 sm:$0xf0]
    %vm4 = vcmask 1047556
    %v5 = vsel %vm4, %v3, %v2
    %vm6 = vcmask 64512
    %7 = vst.msk [vmem:[#allocation0] sm:$0xf] %vm6, %v5
    %s8 = scalar_lea.vmem [#allocation0], 4
    %9 = vst.msk [vmem:[%s8] sm:$0xf0] %vm6, %v5
    %s10 = scalar_lea.vmem %s0, 64
    %v11 = vld [vmem:[%s10] ss:$8 sm:$0xf]
    %vm12 = vcmask 64512
    %s13 = scalar_lea.vmem [#allocation0], 16
    %14 = vst.msk [vmem:[%s13] sm:$0xf] %vm12, %v11
    %s15 = scalar_lea.vmem %s0, 7
    %v16 = vld [vmem:[%s15] ss:$8 sm:$0xf]
    %s17 = scalar_lea.vmem %s0, 7
    %v18 = vld [vmem:[%s17] ss:$8 sm:$0xf0]
    %vm19 = vcmask 1047556
    %v20 = vsel %vm19, %v18, %v16
    %21 = vrot.lane.b32.xlu0 %v20, 56
    %v22 = vpop.permute.xlu0 %21
    %vm23 = vcmask 523712
    %24 = vst.msk [vmem:[#allocation0] sm:$0xf] %vm23, %v22
    %s25 = scalar_lea.vmem [#allocation0], 4
    %26 = vst.msk [vmem:[%s25] sm:$0xf0] %vm23, %v22
    %s27 = scalar_lea.vmem %s0, 71
    %v28 = vld [vmem:[%s27] ss:$8 sm:$0xf]
    %29 = vrot.lane.b32.xlu0 %v28, 56
    %v30 = vpop.permute.xlu0 %29
    %vm31 = vcmask 523712
    %s32 = scalar_lea.vmem [#allocation0], 16
    %33 = vst.msk [vmem:[%s32] sm:$0xf] %vm31, %v30
    %s34 = scalar_lea.vmem %s0, 6
    %v35 = vld [vmem:[%s34] ss:$8 sm:$0xf]
    %s36 = scalar_lea.vmem %s0, 6
    %v37 = vld [vmem:[%s36] ss:$8 sm:$0xf0]
    %vm38 = vcmask 1047556
    %v39 = vsel %vm38, %v37, %v35
    %40 = vrot.lane.b32.xlu0 %v39, 48
    %v41 = vpop.permute.xlu0 %40
    %vm42 = vcmask 458112
    %43 = vst.msk [vmem:[#allocation0] sm:$0xf] %vm42, %v41
    %s44 = scalar_lea.vmem [#allocation0], 4
    %45 = vst.msk [vmem:[%s44] sm:$0xf0] %vm42, %v41
    %s46 = scalar_lea.vmem %s0, 70
    %v47 = vld [vmem:[%s46] ss:$8 sm:$0xf]
    %48 = vrot.lane.b32.xlu0 %v47, 48
    %v49 = vpop.permute.xlu0 %48
    %vm50 = vcmask 458112
    %s51 = scalar_lea.vmem [#allocation0], 16
    %52 = vst.msk [vmem:[%s51] sm:$0xf] %vm50, %v49
    %s53 = scalar_lea.vmem %s0, 5
    %v54 = vld [vmem:[%s53] ss:$8 sm:$0xf]
    %s55 = scalar_lea.vmem %s0, 5
    %v56 = vld [vmem:[%s55] ss:$8 sm:$0xf0]
    %vm57 = vcmask 1047556
    %v58 = vsel %vm57, %v56, %v54
    %59 = vrot.lane.b32.xlu0 %v58, 40
    %v60 = vpop.permute.xlu0 %59
    %vm61 = vcmask 392512
    %62 = vst.msk [vmem:[#allocation0] sm:$0xf] %vm61, %v60
    %s63 = scalar_lea.vmem [#allocation0], 4
    %64 = vst.msk [vmem:[%s63] sm:$0xf0] %vm61, %v60
    %s65 = scalar_lea.vmem %s0, 69
    %v66 = vld [vmem:[%s65] ss:$8 sm:$0xf]
    %67 = vrot.lane.b32.xlu0 %v66, 40
    %v68 = vpop.permute.xlu0 %67
    %vm69 = vcmask 392512
    %s70 = scalar_lea.vmem [#allocation0], 16
    %71 = vst.msk [vmem:[%s70] sm:$0xf] %vm69, %v68
    %s72 = scalar_lea.vmem %s0, 4
    %v73 = vld [vmem:[%s72] ss:$8 sm:$0xf]
    %s74 = scalar_lea.vmem %s0, 4
    %v75 = vld [vmem:[%s74] ss:$8 sm:$0xf0]
    %vm76 = vcmask 1047556
    %v77 = vsel %vm76, %v75, %v73
    %78 = vrot.lane.b32.xlu0 %v77, 32
    %v79 = vpop.permute.xlu0 %78
    %vm80 = vcmask 326912
    %81 = vst.msk [vmem:[#allocation0] sm:$0xf] %vm80, %v79
    %s82 = scalar_lea.vmem [#allocation0], 4
    %83 = vst.msk [vmem:[%s82] sm:$0xf0] %vm80, %v79
    %s84 = scalar_lea.vmem %s0, 68
    %v85 = vld [vmem:[%s84] ss:$8 sm:$0xf]
    %86 = vrot.lane.b32.xlu0 %v85, 32
    %v87 = vpop.permute.xlu0 %86
    %vm88 = vcmask 326912
    %s89 = scalar_lea.vmem [#allocation0], 16
    %90 = vst.msk [vmem:[%s89] sm:$0xf] %vm88, %v87
    %s91 = scalar_lea.vmem %s0, 3
    %v92 = vld [vmem:[%s91] ss:$8 sm:$0xf]
    %s93 = scalar_lea.vmem %s0, 3
    %v94 = vld [vmem:[%s93] ss:$8 sm:$0xf0]
    %vm95 = vcmask 1047556
    %v96 = vsel %vm95, %v94, %v92
    %97 = vrot.lane.b32.xlu0 %v96, 24
    %v98 = vpop.permute.xlu0 %97
    %vm99 = vcmask 261312
    %100 = vst.msk [vmem:[#allocation0] sm:$0xf] %vm99, %v98
    %s101 = scalar_lea.vmem [#allocation0], 4
    %102 = vst.msk [vmem:[%s101] sm:$0xf0] %vm99, %v98
    %s103 = scalar_lea.vmem %s0, 67
    %v104 = vld [vmem:[%s103] ss:$8 sm:$0xf]
    %105 = vrot.lane.b32.xlu0 %v104, 24
    %v106 = vpop.permute.xlu0 %105
    %vm107 = vcmask 261312
    %s108 = scalar_lea.vmem [#allocation0], 16
    %109 = vst.msk [vmem:[%s108] sm:$0xf] %vm107, %v106
    %s110 = scalar_lea.vmem %s0, 2
    %v111 = vld [vmem:[%s110] ss:$8 sm:$0xf]
    %s112 = scalar_lea.vmem %s0, 2
    %v113 = vld [vmem:[%s112] ss:$8 sm:$0xf0]
    %vm114 = vcmask 1047556
    %v115 = vsel %vm114, %v113, %v111
    %116 = vrot.lane.b32.xlu0 %v115, 16
    %v117 = vpop.permute.xlu0 %116
    %vm118 = vcmask 195712
    %119 = vst.msk [vmem:[#allocation0] sm:$0xf] %vm118, %v117
    %s120 = scalar_lea.vmem [#allocation0], 4
    %121 = vst.msk [vmem:[%s120] sm:$0xf0] %vm118, %v117
    %s122 = scalar_lea.vmem %s0, 66
    %v123 = vld [vmem:[%s122] ss:$8 sm:$0xf]
    %124 = vrot.lane.b32.xlu0 %v123, 16
    %v125 = vpop.permute.xlu0 %124
    %vm126 = vcmask 195712
    %s127 = scalar_lea.vmem [#allocation0], 16
    %128 = vst.msk [vmem:[%s127] sm:$0xf] %vm126, %v125
    %s129 = scalar_lea.vmem %s0, 1
    %v130 = vld [vmem:[%s129] ss:$8 sm:$0xf]
    %s131 = scalar_lea.vmem %s0, 1
    %v132 = vld [vmem:[%s131] ss:$8 sm:$0xf0]
    %vm133 = vcmask 1047556
    %v134 = vsel %vm133, %v132, %v130
    %135 = vrot.lane.b32.xlu0 %v134, 8
    %v136 = vpop.permute.xlu0 %135
    %vm137 = vcmask 130112
    %138 = vst.msk [vmem:[#allocation0] sm:$0xf] %vm137, %v136
    %s139 = scalar_lea.vmem [#allocation0], 4
    %140 = vst.msk [vmem:[%s139] sm:$0xf0] %vm137, %v136
    %s141 = scalar_lea.vmem %s0, 65
    %v142 = vld [vmem:[%s141] ss:$8 sm:$0xf]
    %143 = vrot.lane.b32.xlu0 %v142, 8
    %v144 = vpop.permute.xlu0 %143
    %vm145 = vcmask 130112
    %s146 = scalar_lea.vmem [#allocation0], 16
    %147 = vst.msk [vmem:[%s146] sm:$0xf] %vm145, %v144
    %s149 = sshllo.u32 0, 4
    %v151 = vld [vmem:[#allocation0] sm:%s149]
    %s152 = sshllo.u32 0, 4
    %153 = vst [vmem:[%s1] sm:%s152] %v151
    %s154 = scalar_lea.vmem [#allocation0], 8
    %v155 = vld [vmem:[%s154] sm:%s149]
    %s156 = sshllo.u32 0, 4
    %s157 = scalar_lea.vmem %s1, 4
    %158 = vst [vmem:[%s157] sm:%s156] %v155
    %s159 = scalar_lea.vmem [#allocation0], 16
    %v160 = vld [vmem:[%s159] sm:%s149]
    %s161 = sshllo.u32 0, 4
    %s162 = smul.addr 4, 2
    %s163 = scalar_lea.vmem %s1, %s162
    %164 = vst [vmem:[%s163] sm:%s161] %v160

// kernel: squeeze.50
$region0: #{squeeze.50}
  %s0 = inlined_call_operand.vmem [shape: f32[1,12,4,4], index: 0, kind: input, shape index: {}]
  %s1 = inlined_call_operand.vmem [shape: f32[3,4,16], index: 1, kind: output, shape index: {}]
  $region1: #{squeeze.50} parent=0
    #allocation0 [shape = 'u8[12288]{0}', space=vmem, size = 0x3000, scoped, tag = 'scoped mem for output reshape']
    #allocation1 [shape = 'u8[49152]{0}', space=vmem, size = 0xc000, scoped, tag = 'scoped mem for input reshape']
    %s3 = sshllo.u32 0, 4
    %s4 = smul.addr 4, 11
    %s5 = scalar_lea.vmem %s0, %s4
    %v6 = vld [vmem:[%s5] sm:%s3]
    %s7 = scalar_lea.vmem [#allocation1], 88
    %8 = vst [vmem:[%s7] sm:%s3] %v6
    %s9 = smul.addr 4, 10
    %s10 = scalar_lea.vmem %s0, %s9
    %v11 = vld [vmem:[%s10] sm:%s3]
    %s12 = scalar_lea.vmem [#allocation1], 80
    %13 = vst [vmem:[%s12] sm:%s3] %v11
    %s14 = smul.addr 4, 9
    %s15 = scalar_lea.vmem %s0, %s14
    %v16 = vld [vmem:[%s15] sm:%s3]
    %s17 = scalar_lea.vmem [#allocation1], 72
    %18 = vst [vmem:[%s17] sm:%s3] %v16
    %s19 = smul.addr 4, 8
    %s20 = scalar_lea.vmem %s0, %s19
    %v21 = vld [vmem:[%s20] sm:%s3]
    %s22 = scalar_lea.vmem [#allocation1], 64
    %23 = vst [vmem:[%s22] sm:%s3] %v21
    %s24 = smul.addr 4, 7
    %s25 = scalar_lea.vmem %s0, %s24
    %v26 = vld [vmem:[%s25] sm:%s3]
    %s27 = scalar_lea.vmem [#allocation1], 56
    %28 = vst [vmem:[%s27] sm:%s3] %v26
    %s29 = smul.addr 4, 6
    %s30 = scalar_lea.vmem %s0, %s29
    %v31 = vld [vmem:[%s30] sm:%s3]
    %s32 = scalar_lea.vmem [#allocation1], 48
    %33 = vst [vmem:[%s32] sm:%s3] %v31
    %s34 = smul.addr 4, 5
    %s35 = scalar_lea.vmem %s0, %s34
    %v36 = vld [vmem:[%s35] sm:%s3]
    %s37 = scalar_lea.vmem [#allocation1], 40
    %38 = vst [vmem:[%s37] sm:%s3] %v36
    %s39 = smul.addr 4, 4
    %s40 = scalar_lea.vmem %s0, %s39
    %v41 = vld [vmem:[%s40] sm:%s3]
    %s42 = scalar_lea.vmem [#allocation1], 32
    %43 = vst [vmem:[%s42] sm:%s3] %v41
    %s44 = smul.addr 4, 3
    %s45 = scalar_lea.vmem %s0, %s44
    %v46 = vld [vmem:[%s45] sm:%s3]
    %s47 = scalar_lea.vmem [#allocation1], 24
    %48 = vst [vmem:[%s47] sm:%s3] %v46
    %s49 = smul.addr 4, 2
    %s50 = scalar_lea.vmem %s0, %s49
    %v51 = vld [vmem:[%s50] sm:%s3]
    %s52 = scalar_lea.vmem [#allocation1], 16
    %53 = vst [vmem:[%s52] sm:%s3] %v51
    %s54 = scalar_lea.vmem %s0, 4
    %v55 = vld [vmem:[%s54] sm:%s3]
    %s56 = scalar_lea.vmem [#allocation1], 8
    %57 = vst [vmem:[%s56] sm:%s3] %v55
    %v58 = vld [vmem:[%s0] sm:%s3]
    %59 = vst [vmem:[#allocation1] sm:%s3] %v58
    %v60 = vld [vmem:[#allocation1] ss:$8 sm:$0xf]
    %v61 = vld [vmem:[#allocation1] ss:$8 sm:$0xf0]
    %vm62 = vcmask 1047556
    %v63 = vsel %vm62, %v61, %v60
    %vm64 = vcmask 31744
    %65 = vst.msk [vmem:[#allocation0] sm:$0xf] %vm64, %v63
    %s66 = scalar_lea.vmem [#allocation0], 4
    %67 = vst.msk [vmem:[%s66] sm:$0xf0] %vm64, %v63
    %s68 = scalar_lea.vmem [#allocation1], 64
    %v69 = vld [vmem:[%s68] ss:$8 sm:$0xf]
    %vm70 = vcmask 31744
    %s71 = scalar_lea.vmem [#allocation0], 16
    %72 = vst.msk [vmem:[%s71] sm:$0xf] %vm70, %v69
    %s73 = scalar_lea.vmem [#allocation1], 3
    %v74 = vld [vmem:[%s73] ss:$8 sm:$0xf]
    %s75 = scalar_lea.vmem [#allocation1], 3
    %v76 = vld [vmem:[%s75] ss:$8 sm:$0xf0]
    %vm77 = vcmask 1047556
    %v78 = vsel %vm77, %v76, %v74
    %79 = vrot.lane.b32.xlu0 %v78, 12
    %v80 = vpop.permute.xlu0 %79
    %vm81 = vcmask 130144
    %82 = vst.msk [vmem:[#allocation0] sm:$0xf] %vm81, %v80
    %s83 = scalar_lea.vmem [#allocation0], 4
    %84 = vst.msk [vmem:[%s83] sm:$0xf0] %vm81, %v80
    %s85 = scalar_lea.vmem [#allocation1], 67
    %v86 = vld [vmem:[%s85] ss:$8 sm:$0xf]
    %87 = vrot.lane.b32.xlu0 %v86, 12
    %v88 = vpop.permute.xlu0 %87
    %vm89 = vcmask 130144
    %s90 = scalar_lea.vmem [#allocation0], 16
    %91 = vst.msk [vmem:[%s90] sm:$0xf] %vm89, %v88
    %s92 = scalar_lea.vmem [#allocation1], 2
    %v93 = vld [vmem:[%s92] ss:$8 sm:$0xf]
    %s94 = scalar_lea.vmem [#allocation1], 2
    %v95 = vld [vmem:[%s94] ss:$8 sm:$0xf0]
    %vm96 = vcmask 1047556
    %v97 = vsel %vm96, %v95, %v93
    %98 = vrot.lane.b32.xlu0 %v97, 8
    %v99 = vpop.permute.xlu0 %98
    %vm100 = vcmask 97344
    %101 = vst.msk [vmem:[#allocation0] sm:$0xf] %vm100, %v99
    %s102 = scalar_lea.vmem [#allocation0], 4
    %103 = vst.msk [vmem:[%s102] sm:$0xf0] %vm100, %v99
    %s104 = scalar_lea.vmem [#allocation1], 66
    %v105 = vld [vmem:[%s104] ss:$8 sm:$0xf]
    %106 = vrot.lane.b32.xlu0 %v105, 8
    %v107 = vpop.permute.xlu0 %106
    %vm108 = vcmask 97344
    %s109 = scalar_lea.vmem [#allocation0], 16
    %110 = vst.msk [vmem:[%s109] sm:$0xf] %vm108, %v107
    %s111 = scalar_lea.vmem [#allocation1], 1
    %v112 = vld [vmem:[%s111] ss:$8 sm:$0xf]
    %s113 = scalar_lea.vmem [#allocation1], 1
    %v114 = vld [vmem:[%s113] ss:$8 sm:$0xf0]
    %vm115 = vcmask 1047556
    %v116 = vsel %vm115, %v114, %v112
    %117 = vrot.lane.b32.xlu0 %v116, 4
    %v118 = vpop.permute.xlu0 %117
    %vm119 = vcmask 64544
    %120 = vst.msk [vmem:[#allocation0] sm:$0xf] %vm119, %v118
    %s121 = scalar_lea.vmem [#allocation0], 4
    %122 = vst.msk [vmem:[%s121] sm:$0xf0] %vm119, %v118
    %s123 = scalar_lea.vmem [#allocation1], 65
    %v124 = vld [vmem:[%s123] ss:$8 sm:$0xf]
    %125 = vrot.lane.b32.xlu0 %v124, 4
    %v126 = vpop.permute.xlu0 %125
    %vm127 = vcmask 64544
    %s128 = scalar_lea.vmem [#allocation0], 16
    %129 = vst.msk [vmem:[%s128] sm:$0xf] %vm127, %v126
    %s131 = sshllo.u32 0, 4
    %v133 = vld [vmem:[#allocation0] sm:%s131]
    %s134 = sshllo.u32 0, 4
    %135 = vst [vmem:[%s1] sm:%s134] %v133
    %s136 = scalar_lea.vmem [#allocation0], 8
    %v137 = vld [vmem:[%s136] sm:%s131]
    %s138 = sshllo.u32 0, 4
    %s139 = scalar_lea.vmem %s1, 4
    %140 = vst [vmem:[%s139] sm:%s138] %v137
    %s141 = scalar_lea.vmem [#allocation0], 16
    %v142 = vld [vmem:[%s141] sm:%s131]
    %s143 = sshllo.u32 0, 4
    %s144 = smul.addr 4, 2
    %s145 = scalar_lea.vmem %s1, %s144
    %146 = vst [vmem:[%s145] sm:%s143] %v142

// kernel: _yolo_filter_forward.3
$region0: #{_yolo_filter_forward.3}
  #allocation0 [shape = 'u32[]', space=smem, size = 0x4, offset = 0x4, fixed_abs, tag = 'smem constant byte address 0x4 - core index']
  #allocation1 [shape = 'u32[144,128]{1,0:T(1,128)}', space=vmem, size = 0x12000, scoped, tag = 'internal scratch']
  #allocation2 [shape = 's32[1]{0}', space=sflag, size = 0x4, scoped, tag = 'scoped memory for _yolo_filter_forward.3']
  #allocation3 [shape = 'f32[1]{0:T(128)S(6)}', space=smem, size = 0x200, scoped, tag = 'prefetched SMEM operand 0']
  %s0 = inlined_call_operand.<no memory space> [shape: f32[1], index: 0, kind: input, shape index: {}]
  %s1 = inlined_call_operand.vmem [shape: f32[3,4,256], index: 1, kind: input, shape index: {}]
  %s2 = inlined_call_operand.vmem [shape: f32[3,4,256], index: 2, kind: output, shape index: {0}]
  %s3 = inlined_call_operand.vmem [shape: s32[3,1,256], index: 3, kind: output, shape index: {1}]
  %4 = xla_tuple %s2, %s3
  %s5 = sld [smem:[#allocation0]]
  $region45: #{_yolo_filter_forward.3} parent=0
    _
  %s7 = ssub.s32 1, %s5
  %s8 = scalar_select 0, %s7, %s5
  %9 = sst [smem:[#allocation3]] %s0
  loop: start=0, step=1, limit=5
  $region2: #{_yolo_filter_forward.3} parent=0 // loop_pre_header
    _
  $region3: #{_yolo_filter_forward.3} parent=0 // loop_header
    %s11 = sphi 0, %s15
    %p12 = scmp.ge.s32.totalorder %s11, 5
    %s18 = sphi 0, %s30
    %s19 = sphi 0, %s26
    %s20 = sphi 0, %s18
    %s21 = sphi 0, %s19
    %s22 = sphi 0, %s20
    %s23 = sphi 0, %s21
    %s35 = sphi 0, %s37
    %s38 = sphi 0, %s35
    %s39 = sphi 0, %s38
    %s55 = sphi 0, %s39
    %s63 = sphi 0, %s65
    %s66 = sphi 0, %s63
    %s67 = sphi 0, %s66
    %s83 = sphi 0, %s67
    %s91 = sphi 0, %s93
    %s94 = sphi 0, %s91
    %s95 = sphi 0, %s94
    %s111 = sphi 0, %s95
  $region4: #{_yolo_filter_forward.3} parent=0 // loop_header_branch
    %14 = sbr.rel (%p12) target = $region8
  $region5: #{_yolo_filter_forward.3} parent=0 // loop_body
    %s16 = ssub.s32 %s11, 1
    %s17 = ssub.s32 %s11, 2
    %s24 = sadd.s32 1, %s19
    %p25 = scmp.ge.s32.totalorder %s24, 1
    %s26 = scalar_select %p25, 0, %s24
    %s27 = sadd.s32 1, %s18
    %s28 = scalar_select %p25, %s27, %s18
    %p29 = scmp.ge.s32.totalorder %s28, 3
    %s30 = scalar_select %p29, 0, %s28
    %s31 = ssub.s32 %s18, %s30
    %s32 = ssub.s32 %s19, %s26
    %s33 = sor.u32 %s31, %s32
    %p34 = scmp.eq.s32.totalorder %s33, 0
    %s36 = sadd.s32 %s35, 1
    %s37 = scalar_select %p34, %s35, %s36
    %p40 = pneg %p34
    %p41 = scmp.eq.s32.totalorder %s11, 2
    %p42 = por %p40, %p41
    %p43 = scmp.ne.s32.totalorder %s35, %s38
    %p44 = scmp.eq.s32.totalorder %s11, 0
    %p45 = por %p43, %p44
    %p46 = scmp.ne.s32.totalorder %s35, %s38
    %p47 = scmp.eq.s32.totalorder %s16, 2
    %p48 = por %p46, %p47
    %p49 = scmp.ne.s32.totalorder %s38, %s39
    %p50 = scmp.eq.s32.totalorder %s16, 0
    %p51 = por %p49, %p50
    %p52 = scmp.ne.s32.totalorder %s38, %s39
    %p53 = scmp.eq.s32.totalorder %s17, 2
    %p54 = por %p52, %p53
    %p56 = scmp.ne.s32.totalorder %s39, %s55
    %p57 = scmp.eq.s32.totalorder %s17, 0
    %p58 = por %p56, %p57
    %s59 = ssub.s32 %s18, %s30
    %s60 = ssub.s32 %s19, %s26
    %s61 = sor.u32 %s59, %s60
    %p62 = scmp.eq.s32.totalorder %s61, 0
    %s64 = sadd.s32 %s63, 1
    %s65 = scalar_select %p62, %s63, %s64
    %p68 = pneg %p62
    %p69 = scmp.eq.s32.totalorder %s11, 2
    %p70 = por %p68, %p69
    %p71 = scmp.ne.s32.totalorder %s63, %s66
    %p72 = scmp.eq.s32.totalorder %s11, 0
    %p73 = por %p71, %p72
    %p74 = scmp.ne.s32.totalorder %s63, %s66
    %p75 = scmp.eq.s32.totalorder %s16, 2
    %p76 = por %p74, %p75
    %p77 = scmp.ne.s32.totalorder %s66, %s67
    %p78 = scmp.eq.s32.totalorder %s16, 0
    %p79 = por %p77, %p78
    %p80 = scmp.ne.s32.totalorder %s66, %s67
    %p81 = scmp.eq.s32.totalorder %s17, 2
    %p82 = por %p80, %p81
    %p84 = scmp.ne.s32.totalorder %s67, %s83
    %p85 = scmp.eq.s32.totalorder %s17, 0
    %p86 = por %p84, %p85
    %s87 = ssub.s32 %s18, %s30
    %s88 = ssub.s32 %s19, %s26
    %s89 = sor.u32 %s87, %s88
    %p90 = scmp.eq.s32.totalorder %s89, 0
    %s92 = sadd.s32 %s91, 1
    %s93 = scalar_select %p90, %s91, %s92
    %p96 = pneg %p90
    %p97 = scmp.eq.s32.totalorder %s11, 2
    %p98 = por %p96, %p97
    %p99 = scmp.ne.s32.totalorder %s91, %s94
    %p100 = scmp.eq.s32.totalorder %s11, 0
    %p101 = por %p99, %p100
    %p102 = scmp.ne.s32.totalorder %s91, %s94
    %p103 = scmp.eq.s32.totalorder %s16, 2
    %p104 = por %p102, %p103
    %p105 = scmp.ne.s32.totalorder %s94, %s95
    %p106 = scmp.eq.s32.totalorder %s16, 0
    %p107 = por %p105, %p106
    %p108 = scmp.ne.s32.totalorder %s94, %s95
    %p109 = scmp.eq.s32.totalorder %s17, 2
    %p110 = por %p108, %p109
    %p112 = scmp.ne.s32.totalorder %s95, %s111
    %p113 = scmp.eq.s32.totalorder %s17, 0
    %p114 = por %p112, %p113
    %p115 = scmp.le.s32.totalorder 1, %s11
    %p116 = scmp.lt.s32.totalorder %s11, 4
    %p117 = pnand %p115, %p116
    %p118 = pneg %p117
    // Predicated region
    $region9: #{_yolo_filter_forward.3} parent=5 // pred_check
      _
    $region10: #{_yolo_filter_forward.3} parent=5 // pred_check_branch
      %120 = sbr.rel (%p117) target = $region12
    $region11: #{_yolo_filter_forward.3} parent=5 // pred_region
      %s121 = ssub.s32 %s11, 1
    $region12: #{_yolo_filter_forward.3} parent=5 // pred_fallthru
      _
    %p122 = scmp.lt.s32.totalorder %s11, 3
    // Predicated region
    $region13: #{_yolo_filter_forward.3} parent=5 // pred_check
      %p123 = pneg %p122
    $region14: #{_yolo_filter_forward.3} parent=5 // pred_check_branch
      %125 = sbr.rel (%p123) target = $region16
    $region15: #{_yolo_filter_forward.3} parent=5 // pred_region
      // Predicated region
      $region17: #{_yolo_filter_forward.3} parent=15 // pred_check
        %p126 = pneg %p45
      $region18: #{_yolo_filter_forward.3} parent=15 // pred_check_branch
        %128 = sbr.rel (%p126) target = $region20
      $region19: #{_yolo_filter_forward.3} parent=15 // pred_region
        %s129 = smul.u32 2, %s19
        %p130 = scmp.lt.s32.totalorder %s18, 2
        %s131 = scalar_select %p130, %s18, 2
        %p132 = scmp.lt.s32.totalorder %s129, 1
        %s133 = scalar_select %p132, %s129, 1
        %s134 = smul.addr %s131, 2
        %s135 = sadd.s32 %s133, %s134
        %s136 = smul.addr %s135, 4
        %s137 = scalar_lea.vmem %s1, %s136
        %s138 = smul.u32 2, %s19
      $region20: #{_yolo_filter_forward.3} parent=15 // pred_fallthru
        _
    $region16: #{_yolo_filter_forward.3} parent=5 // pred_fallthru
      _
    %p139 = scmp.le.s32.totalorder 1, %s11
    %p140 = scmp.lt.s32.totalorder %s11, 4
    %p141 = pnand %p139, %p140
    %p142 = pneg %p141
    // Predicated region
    $region21: #{_yolo_filter_forward.3} parent=5 // pred_check
      _
    $region22: #{_yolo_filter_forward.3} parent=5 // pred_check_branch
      %144 = sbr.rel (%p141) target = $region24
    $region23: #{_yolo_filter_forward.3} parent=5 // pred_region
      %s145 = ssub.s32 %s11, 1
      %s146 = smul.u32 2, %s21
      %p147 = scmp.lt.s32.totalorder %s20, 2
      %s148 = scalar_select %p147, %s20, 2
      %p149 = scmp.lt.s32.totalorder %s146, 1
      %s150 = scalar_select %p149, %s146, 1
      %s151 = smul.addr %s148, 2
      %s152 = sadd.s32 %s150, %s151
      %s153 = smul.addr %s152, 4
      %s154 = scalar_lea.vmem %s1, %s153
      %p155 = pneg %p51
      %p156 = pneg %p48
      %p157 = pneg %p79
      %p158 = pneg %p76
      %s159 = smul.u32 2, %s21
      %p160 = scmp.lt.s32.totalorder %s20, 2
      %s161 = scalar_select %p160, %s20, 2
      %p162 = scmp.lt.s32.totalorder %s159, 1
      %s163 = scalar_select %p162, %s159, 1
      %s164 = smul.addr %s161, 2
      %s165 = sadd.s32 %s163, %s164
      %s166 = smul.addr %s165, 4
      %s167 = scalar_lea.vmem %s2, %s166
      %p168 = pneg %p107
      %p169 = pneg %p104
      %s170 = smul.u32 2, %s21
      %p171 = scmp.lt.s32.totalorder %s20, 2
      %s172 = scalar_select %p171, %s20, 2
      %p173 = scmp.lt.s32.totalorder %s170, 1
      %s174 = scalar_select %p173, %s170, 1
      %s175 = smul.addr %s172, 2
      %s176 = sadd.s32 %s174, %s175
      %s177 = scalar_lea.vmem %s3, %s176
      %s178 = smul.u32 2, %s21
      %p179 = scmp.lt.s32.totalorder %s20, 2
      %s180 = scalar_select %p179, %s20, 2
      %p181 = scmp.lt.s32.totalorder %s178, 1
      %s182 = scalar_select %p181, %s178, 1
      %s183 = smul.addr %s180, 2
      %s184 = sadd.s32 %s182, %s183
      %s185 = smul.addr %s184, 4
      %s186 = scalar_lea.vmem %s1, %s185
      %s187 = smul.u32 2, %s21
      %s188 = smul.u32 2, %s21
      %p189 = scmp.lt.s32.totalorder %s20, 2
      %s190 = scalar_select %p189, %s20, 2
      %p191 = scmp.lt.s32.totalorder %s188, 1
      %s192 = scalar_select %p191, %s188, 1
      %s193 = smul.addr %s190, 2
      %s194 = sadd.s32 %s192, %s193
      %s195 = smul.addr %s194, 4
      %s196 = scalar_lea.vmem %s2, %s195
      %s197 = smul.u32 2, %s21
      %s198 = smul.u32 2, %s21
      %p199 = scmp.lt.s32.totalorder %s20, 2
      %s200 = scalar_select %p199, %s20, 2
      %p201 = scmp.lt.s32.totalorder %s198, 1
      %s202 = scalar_select %p201, %s198, 1
      %s203 = smul.addr %s200, 2
      %s204 = sadd.s32 %s202, %s203
      %s205 = scalar_lea.vmem %s3, %s204
      %s206 = smul.u32 2, %s21
      %s207 = sld [smem:[#allocation3]]
      %v208 = vld [vmem:[%s186] ss:$4 sm:$0x3]
      %s209 = scalar_lea.vmem %s186, 1
      %v210 = vld [vmem:[%s209] ss:$4 sm:$0x3]
      %v211 = vmax.f32 %v208, %v210
      %v212 = vstv %s207
      %vm213 = vcmp.ge.f32.partialorder %v211, %v212
      %v214 = vld [vmem:[%s186] sm:$0xff]
      %v215 = vsel %vm213, 1, 0
      %v216 = vlaneseq
      %v217 = vshrl.u32 %v216, 7
      %v218 = vsub.s32 0, %v217
      %v219 = vrot.slane %v215, %v218
      %v220 = vlaneseq
      %v221 = vshrl.u32 %v220, 7
      %v222 = vsub.s32 1, %v221
      %v223 = vrot.slane %v215, %v222
      %vm224 = vcmp.eq.s32.totalorder %v219, 1
      %vm225 = vcmp.eq.s32.totalorder %v223, 1
      %v227 = vcombine.high %v214, %v214
      %v229 = vsel %vm224, %v214, 0.0
      %v230 = vsel %vm225, %v227, 0.0
      %v233 = vcombine.low %v229, %v230
      %235 = vst [vmem:[%s196] sm:$0xff] %v233
      %v236 = vlaneseq
      %vm237 = vcmp.ge.s32.totalorder %v236, 0
      %vm238 = vcmp.lt.s32.totalorder %v236, 256
      %vm239 = vmand %vm237, %vm238
      %240 = vst.msk [vmem:[%s205] sm:$0x3] %vm239, %v215
      %s241 = smul.u32 2, %s21
      %p242 = scmp.lt.s32.totalorder %s20, 2
      %s243 = scalar_select %p242, %s20, 2
      %p244 = scmp.lt.s32.totalorder %s241, 1
      %s245 = scalar_select %p244, %s241, 1
      %s246 = smul.addr %s243, 2
      %s247 = sadd.s32 %s245, %s246
      %s248 = smul.addr %s247, 4
      %s249 = scalar_lea.vmem %s2, %s248
      %s250 = smul.u32 2, %s21
      %p251 = scmp.lt.s32.totalorder %s20, 2
      %s252 = scalar_select %p251, %s20, 2
      %p253 = scmp.lt.s32.totalorder %s250, 1
      %s254 = scalar_select %p253, %s250, 1
      %s255 = smul.addr %s252, 2
      %s256 = sadd.s32 %s254, %s255
      %s257 = scalar_lea.vmem %s3, %s256
      // Predicated region
      $region25: #{_yolo_filter_forward.3} parent=23 // pred_check
        %p258 = pneg %p76
      $region26: #{_yolo_filter_forward.3} parent=23 // pred_check_branch
        %260 = sbr.rel (%p258) target = $region28
      $region27: #{_yolo_filter_forward.3} parent=23 // pred_region
        %s261 = smul.u32 2, %s21
      $region28: #{_yolo_filter_forward.3} parent=23 // pred_fallthru
        _
      // Predicated region
      $region29: #{_yolo_filter_forward.3} parent=23 // pred_check
        %p262 = pneg %p104
      $region30: #{_yolo_filter_forward.3} parent=23 // pred_check_branch
        %264 = sbr.rel (%p262) target = $region32
      $region31: #{_yolo_filter_forward.3} parent=23 // pred_region
        %s265 = smul.u32 2, %s21
      $region32: #{_yolo_filter_forward.3} parent=23 // pred_fallthru
        _
    $region24: #{_yolo_filter_forward.3} parent=5 // pred_fallthru
      _
    %p266 = scmp.le.s32.totalorder 2, %s11
    // Predicated region
    $region33: #{_yolo_filter_forward.3} parent=5 // pred_check
      %p267 = pneg %p266
    $region34: #{_yolo_filter_forward.3} parent=5 // pred_check_branch
      %269 = sbr.rel (%p267) target = $region36
    $region35: #{_yolo_filter_forward.3} parent=5 // pred_region
      %s270 = ssub.s32 %s11, 2
      // Predicated region
      $region37: #{_yolo_filter_forward.3} parent=35 // pred_check
        %p271 = pneg %p82
      $region38: #{_yolo_filter_forward.3} parent=35 // pred_check_branch
        %273 = sbr.rel (%p271) target = $region40
      $region39: #{_yolo_filter_forward.3} parent=35 // pred_region
        %s274 = smul.u32 2, %s23
        %p275 = scmp.lt.s32.totalorder %s22, 2
        %s276 = scalar_select %p275, %s22, 2
        %p277 = scmp.lt.s32.totalorder %s274, 1
        %s278 = scalar_select %p277, %s274, 1
        %s279 = smul.addr %s276, 2
        %s280 = sadd.s32 %s278, %s279
        %s281 = smul.addr %s280, 4
        %s282 = scalar_lea.vmem %s2, %s281
      $region40: #{_yolo_filter_forward.3} parent=35 // pred_fallthru
        _
      // Predicated region
      $region41: #{_yolo_filter_forward.3} parent=35 // pred_check
        %p283 = pneg %p110
      $region42: #{_yolo_filter_forward.3} parent=35 // pred_check_branch
        %285 = sbr.rel (%p283) target = $region44
      $region43: #{_yolo_filter_forward.3} parent=35 // pred_region
        %s286 = smul.u32 2, %s23
        %p287 = scmp.lt.s32.totalorder %s22, 2
        %s288 = scalar_select %p287, %s22, 2
        %p289 = scmp.lt.s32.totalorder %s286, 1
        %s290 = scalar_select %p289, %s286, 1
        %s291 = smul.addr %s288, 2
        %s292 = sadd.s32 %s290, %s291
        %s293 = scalar_lea.vmem %s3, %s292
      $region44: #{_yolo_filter_forward.3} parent=35 // pred_fallthru
        _
    $region36: #{_yolo_filter_forward.3} parent=5 // pred_fallthru
      _
  $region6: #{_yolo_filter_forward.3} parent=0 // loop_footer
    %s15 = sadd.s32 1, %s11
  $region7: #{_yolo_filter_forward.3} parent=0 // loop_footer_branch
    %10 = sbr.rel target = $region3
  $region8: #{_yolo_filter_forward.3} parent=0 // loop_exit
    _

// kernel: _yolo_filter_forward.4
$region0: #{_yolo_filter_forward.4}
  #allocation0 [shape = 'u32[]', space=smem, size = 0x4, offset = 0x4, fixed_abs, tag = 'smem constant byte address 0x4 - core index']
  #allocation1 [shape = 'u32[144,128]{1,0:T(1,128)}', space=vmem, size = 0x12000, scoped, tag = 'internal scratch']
  #allocation2 [shape = 's32[1]{0}', space=sflag, size = 0x4, scoped, tag = 'scoped memory for _yolo_filter_forward.4']
  #allocation3 [shape = 'f32[1]{0:T(128)S(6)}', space=smem, size = 0x200, scoped, tag = 'prefetched SMEM operand 0']
  %s0 = inlined_call_operand.<no memory space> [shape: f32[1], index: 0, kind: input, shape index: {}]
  %s1 = inlined_call_operand.vmem [shape: f32[3,4,64], index: 1, kind: input, shape index: {}]
  %s2 = inlined_call_operand.vmem [shape: f32[3,4,64], index: 2, kind: output, shape index: {0}]
  %s3 = inlined_call_operand.vmem [shape: s32[3,1,64], index: 3, kind: output, shape index: {1}]
  %4 = xla_tuple %s2, %s3
  %s5 = sld [smem:[#allocation0]]
  $region45: #{_yolo_filter_forward.4} parent=0
    _
  %s7 = ssub.s32 1, %s5
  %s8 = scalar_select 0, %s7, %s5
  %9 = sst [smem:[#allocation3]] %s0
  loop: start=0, step=1, limit=5
  $region2: #{_yolo_filter_forward.4} parent=0 // loop_pre_header
    _
  $region3: #{_yolo_filter_forward.4} parent=0 // loop_header
    %s11 = sphi 0, %s15
    %p12 = scmp.ge.s32.totalorder %s11, 5
    %s18 = sphi 0, %s30
    %s19 = sphi 0, %s26
    %s20 = sphi 0, %s18
    %s21 = sphi 0, %s19
    %s22 = sphi 0, %s20
    %s23 = sphi 0, %s21
    %s35 = sphi 0, %s37
    %s38 = sphi 0, %s35
    %s39 = sphi 0, %s38
    %s55 = sphi 0, %s39
    %s63 = sphi 0, %s65
    %s66 = sphi 0, %s63
    %s67 = sphi 0, %s66
    %s83 = sphi 0, %s67
    %s91 = sphi 0, %s93
    %s94 = sphi 0, %s91
    %s95 = sphi 0, %s94
    %s111 = sphi 0, %s95
  $region4: #{_yolo_filter_forward.4} parent=0 // loop_header_branch
    %14 = sbr.rel (%p12) target = $region8
  $region5: #{_yolo_filter_forward.4} parent=0 // loop_body
    %s16 = ssub.s32 %s11, 1
    %s17 = ssub.s32 %s11, 2
    %s24 = sadd.s32 1, %s19
    %p25 = scmp.ge.s32.totalorder %s24, 1
    %s26 = scalar_select %p25, 0, %s24
    %s27 = sadd.s32 1, %s18
    %s28 = scalar_select %p25, %s27, %s18
    %p29 = scmp.ge.s32.totalorder %s28, 3
    %s30 = scalar_select %p29, 0, %s28
    %s31 = ssub.s32 %s18, %s30
    %s32 = ssub.s32 %s19, %s26
    %s33 = sor.u32 %s31, %s32
    %p34 = scmp.eq.s32.totalorder %s33, 0
    %s36 = sadd.s32 %s35, 1
    %s37 = scalar_select %p34, %s35, %s36
    %p40 = pneg %p34
    %p41 = scmp.eq.s32.totalorder %s11, 2
    %p42 = por %p40, %p41
    %p43 = scmp.ne.s32.totalorder %s35, %s38
    %p44 = scmp.eq.s32.totalorder %s11, 0
    %p45 = por %p43, %p44
    %p46 = scmp.ne.s32.totalorder %s35, %s38
    %p47 = scmp.eq.s32.totalorder %s16, 2
    %p48 = por %p46, %p47
    %p49 = scmp.ne.s32.totalorder %s38, %s39
    %p50 = scmp.eq.s32.totalorder %s16, 0
    %p51 = por %p49, %p50
    %p52 = scmp.ne.s32.totalorder %s38, %s39
    %p53 = scmp.eq.s32.totalorder %s17, 2
    %p54 = por %p52, %p53
    %p56 = scmp.ne.s32.totalorder %s39, %s55
    %p57 = scmp.eq.s32.totalorder %s17, 0
    %p58 = por %p56, %p57
    %s59 = ssub.s32 %s18, %s30
    %s60 = ssub.s32 %s19, %s26
    %s61 = sor.u32 %s59, %s60
    %p62 = scmp.eq.s32.totalorder %s61, 0
    %s64 = sadd.s32 %s63, 1
    %s65 = scalar_select %p62, %s63, %s64
    %p68 = pneg %p62
    %p69 = scmp.eq.s32.totalorder %s11, 2
    %p70 = por %p68, %p69
    %p71 = scmp.ne.s32.totalorder %s63, %s66
    %p72 = scmp.eq.s32.totalorder %s11, 0
    %p73 = por %p71, %p72
    %p74 = scmp.ne.s32.totalorder %s63, %s66
    %p75 = scmp.eq.s32.totalorder %s16, 2
    %p76 = por %p74, %p75
    %p77 = scmp.ne.s32.totalorder %s66, %s67
    %p78 = scmp.eq.s32.totalorder %s16, 0
    %p79 = por %p77, %p78
    %p80 = scmp.ne.s32.totalorder %s66, %s67
    %p81 = scmp.eq.s32.totalorder %s17, 2
    %p82 = por %p80, %p81
    %p84 = scmp.ne.s32.totalorder %s67, %s83
    %p85 = scmp.eq.s32.totalorder %s17, 0
    %p86 = por %p84, %p85
    %s87 = ssub.s32 %s18, %s30
    %s88 = ssub.s32 %s19, %s26
    %s89 = sor.u32 %s87, %s88
    %p90 = scmp.eq.s32.totalorder %s89, 0
    %s92 = sadd.s32 %s91, 1
    %s93 = scalar_select %p90, %s91, %s92
    %p96 = pneg %p90
    %p97 = scmp.eq.s32.totalorder %s11, 2
    %p98 = por %p96, %p97
    %p99 = scmp.ne.s32.totalorder %s91, %s94
    %p100 = scmp.eq.s32.totalorder %s11, 0
    %p101 = por %p99, %p100
    %p102 = scmp.ne.s32.totalorder %s91, %s94
    %p103 = scmp.eq.s32.totalorder %s16, 2
    %p104 = por %p102, %p103
    %p105 = scmp.ne.s32.totalorder %s94, %s95
    %p106 = scmp.eq.s32.totalorder %s16, 0
    %p107 = por %p105, %p106
    %p108 = scmp.ne.s32.totalorder %s94, %s95
    %p109 = scmp.eq.s32.totalorder %s17, 2
    %p110 = por %p108, %p109
    %p112 = scmp.ne.s32.totalorder %s95, %s111
    %p113 = scmp.eq.s32.totalorder %s17, 0
    %p114 = por %p112, %p113
    %p115 = scmp.le.s32.totalorder 1, %s11
    %p116 = scmp.lt.s32.totalorder %s11, 4
    %p117 = pnand %p115, %p116
    %p118 = pneg %p117
    // Predicated region
    $region9: #{_yolo_filter_forward.4} parent=5 // pred_check
      _
    $region10: #{_yolo_filter_forward.4} parent=5 // pred_check_branch
      %120 = sbr.rel (%p117) target = $region12
    $region11: #{_yolo_filter_forward.4} parent=5 // pred_region
      %s121 = ssub.s32 %s11, 1
    $region12: #{_yolo_filter_forward.4} parent=5 // pred_fallthru
      _
    %p122 = scmp.lt.s32.totalorder %s11, 3
    // Predicated region
    $region13: #{_yolo_filter_forward.4} parent=5 // pred_check
      %p123 = pneg %p122
    $region14: #{_yolo_filter_forward.4} parent=5 // pred_check_branch
      %125 = sbr.rel (%p123) target = $region16
    $region15: #{_yolo_filter_forward.4} parent=5 // pred_region
      // Predicated region
      $region17: #{_yolo_filter_forward.4} parent=15 // pred_check
        %p126 = pneg %p45
      $region18: #{_yolo_filter_forward.4} parent=15 // pred_check_branch
        %128 = sbr.rel (%p126) target = $region20
      $region19: #{_yolo_filter_forward.4} parent=15 // pred_region
        %p129 = scmp.lt.s32.totalorder %s18, 2
        %s130 = scalar_select %p129, %s18, 2
        %p131 = scmp.lt.s32.totalorder %s19, 0
        %s132 = scalar_select %p131, %s19, 0
        %s133 = sadd.s32 %s132, %s130
        %s134 = smul.addr %s133, 4
        %s135 = scalar_lea.vmem %s1, %s134
      $region20: #{_yolo_filter_forward.4} parent=15 // pred_fallthru
        _
    $region16: #{_yolo_filter_forward.4} parent=5 // pred_fallthru
      _
    %p136 = scmp.le.s32.totalorder 1, %s11
    %p137 = scmp.lt.s32.totalorder %s11, 4
    %p138 = pnand %p136, %p137
    %p139 = pneg %p138
    // Predicated region
    $region21: #{_yolo_filter_forward.4} parent=5 // pred_check
      _
    $region22: #{_yolo_filter_forward.4} parent=5 // pred_check_branch
      %141 = sbr.rel (%p138) target = $region24
    $region23: #{_yolo_filter_forward.4} parent=5 // pred_region
      %s142 = ssub.s32 %s11, 1
      %p143 = scmp.lt.s32.totalorder %s20, 2
      %s144 = scalar_select %p143, %s20, 2
      %p145 = scmp.lt.s32.totalorder %s21, 0
      %s146 = scalar_select %p145, %s21, 0
      %s147 = sadd.s32 %s146, %s144
      %s148 = smul.addr %s147, 4
      %s149 = scalar_lea.vmem %s1, %s148
      %p150 = pneg %p51
      %p151 = pneg %p48
      %p152 = pneg %p79
      %p153 = pneg %p76
      %p154 = scmp.lt.s32.totalorder %s20, 2
      %s155 = scalar_select %p154, %s20, 2
      %p156 = scmp.lt.s32.totalorder %s21, 0
      %s157 = scalar_select %p156, %s21, 0
      %s158 = sadd.s32 %s157, %s155
      %s159 = smul.addr %s158, 4
      %s160 = scalar_lea.vmem %s2, %s159
      %p161 = pneg %p107
      %p162 = pneg %p104
      %p163 = scmp.lt.s32.totalorder %s20, 2
      %s164 = scalar_select %p163, %s20, 2
      %p165 = scmp.lt.s32.totalorder %s21, 0
      %s166 = scalar_select %p165, %s21, 0
      %s167 = sadd.s32 %s166, %s164
      %s168 = scalar_lea.vmem %s3, %s167
      %p169 = scmp.lt.s32.totalorder %s20, 2
      %s170 = scalar_select %p169, %s20, 2
      %p171 = scmp.lt.s32.totalorder %s21, 0
      %s172 = scalar_select %p171, %s21, 0
      %s173 = sadd.s32 %s172, %s170
      %s174 = smul.addr %s173, 4
      %s175 = scalar_lea.vmem %s1, %s174
      %p176 = scmp.lt.s32.totalorder %s20, 2
      %s177 = scalar_select %p176, %s20, 2
      %p178 = scmp.lt.s32.totalorder %s21, 0
      %s179 = scalar_select %p178, %s21, 0
      %s180 = sadd.s32 %s179, %s177
      %s181 = smul.addr %s180, 4
      %s182 = scalar_lea.vmem %s2, %s181
      %p183 = scmp.lt.s32.totalorder %s20, 2
      %s184 = scalar_select %p183, %s20, 2
      %p185 = scmp.lt.s32.totalorder %s21, 0
      %s186 = scalar_select %p185, %s21, 0
      %s187 = sadd.s32 %s186, %s184
      %s188 = scalar_lea.vmem %s3, %s187
      %s189 = sld [smem:[#allocation3]]
      %v190 = vld [vmem:[%s175] sm:$0x1]
      %v191 = vld [vmem:[%s175 + $0x1] sm:$0x1]
      %v192 = vmax.f32 %v190, %v191
      %v193 = vstv %s189
      %vm194 = vcmp.ge.f32.partialorder %v192, %v193
      %v195 = vld [vmem:[%s175] sm:$0xf]
      %v196 = vsel %vm194, 1, 0
      %v197 = vlaneseq
      %v198 = vshrl.u32 %v197, 7
      %v199 = vsub.s32 0, %v198
      %v200 = vrot.slane %v196, %v199
      %vm201 = vcmp.eq.s32.totalorder %v200, 1
      %v202 = vsel %vm201, %v195, 0.0
      %vm203 = vcmask 519168
      %204 = vst.msk [vmem:[%s182] sm:$0xf] %vm203, %v202
      %vm205 = vcmask 516096
      %206 = vst.msk [vmem:[%s188] sm:$0x1] %vm205, %v196
      %p207 = scmp.lt.s32.totalorder %s20, 2
      %s208 = scalar_select %p207, %s20, 2
      %p209 = scmp.lt.s32.totalorder %s21, 0
      %s210 = scalar_select %p209, %s21, 0
      %s211 = sadd.s32 %s210, %s208
      %s212 = smul.addr %s211, 4
      %s213 = scalar_lea.vmem %s2, %s212
      %p214 = scmp.lt.s32.totalorder %s20, 2
      %s215 = scalar_select %p214, %s20, 2
      %p216 = scmp.lt.s32.totalorder %s21, 0
      %s217 = scalar_select %p216, %s21, 0
      %s218 = sadd.s32 %s217, %s215
      %s219 = scalar_lea.vmem %s3, %s218
      // Predicated region
      $region25: #{_yolo_filter_forward.4} parent=23 // pred_check
        %p220 = pneg %p76
      $region26: #{_yolo_filter_forward.4} parent=23 // pred_check_branch
        %222 = sbr.rel (%p220) target = $region28
      $region27: #{_yolo_filter_forward.4} parent=23 // pred_region
        _
      $region28: #{_yolo_filter_forward.4} parent=23 // pred_fallthru
        _
      // Predicated region
      $region29: #{_yolo_filter_forward.4} parent=23 // pred_check
        %p223 = pneg %p104
      $region30: #{_yolo_filter_forward.4} parent=23 // pred_check_branch
        %225 = sbr.rel (%p223) target = $region32
      $region31: #{_yolo_filter_forward.4} parent=23 // pred_region
        _
      $region32: #{_yolo_filter_forward.4} parent=23 // pred_fallthru
        _
    $region24: #{_yolo_filter_forward.4} parent=5 // pred_fallthru
      _
    %p226 = scmp.le.s32.totalorder 2, %s11
    // Predicated region
    $region33: #{_yolo_filter_forward.4} parent=5 // pred_check
      %p227 = pneg %p226
    $region34: #{_yolo_filter_forward.4} parent=5 // pred_check_branch
      %229 = sbr.rel (%p227) target = $region36
    $region35: #{_yolo_filter_forward.4} parent=5 // pred_region
      %s230 = ssub.s32 %s11, 2
      // Predicated region
      $region37: #{_yolo_filter_forward.4} parent=35 // pred_check
        %p231 = pneg %p82
      $region38: #{_yolo_filter_forward.4} parent=35 // pred_check_branch
        %233 = sbr.rel (%p231) target = $region40
      $region39: #{_yolo_filter_forward.4} parent=35 // pred_region
        %p234 = scmp.lt.s32.totalorder %s22, 2
        %s235 = scalar_select %p234, %s22, 2
        %p236 = scmp.lt.s32.totalorder %s23, 0
        %s237 = scalar_select %p236, %s23, 0
        %s238 = sadd.s32 %s237, %s235
        %s239 = smul.addr %s238, 4
        %s240 = scalar_lea.vmem %s2, %s239
      $region40: #{_yolo_filter_forward.4} parent=35 // pred_fallthru
        _
      // Predicated region
      $region41: #{_yolo_filter_forward.4} parent=35 // pred_check
        %p241 = pneg %p110
      $region42: #{_yolo_filter_forward.4} parent=35 // pred_check_branch
        %243 = sbr.rel (%p241) target = $region44
      $region43: #{_yolo_filter_forward.4} parent=35 // pred_region
        %p244 = scmp.lt.s32.totalorder %s22, 2
        %s245 = scalar_select %p244, %s22, 2
        %p246 = scmp.lt.s32.totalorder %s23, 0
        %s247 = scalar_select %p246, %s23, 0
        %s248 = sadd.s32 %s247, %s245
        %s249 = scalar_lea.vmem %s3, %s248
      $region44: #{_yolo_filter_forward.4} parent=35 // pred_fallthru
        _
    $region36: #{_yolo_filter_forward.4} parent=5 // pred_fallthru
      _
  $region6: #{_yolo_filter_forward.4} parent=0 // loop_footer
    %s15 = sadd.s32 1, %s11
  $region7: #{_yolo_filter_forward.4} parent=0 // loop_footer_branch
    %10 = sbr.rel target = $region3
  $region8: #{_yolo_filter_forward.4} parent=0 // loop_exit
    _

// kernel: _yolo_filter_forward.5
$region0: #{_yolo_filter_forward.5}
  #allocation0 [shape = 'u32[]', space=smem, size = 0x4, offset = 0x4, fixed_abs, tag = 'smem constant byte address 0x4 - core index']
  #allocation1 [shape = 'u32[144,128]{1,0:T(1,128)}', space=vmem, size = 0x12000, scoped, tag = 'internal scratch']
  #allocation2 [shape = 's32[1]{0}', space=sflag, size = 0x4, scoped, tag = 'scoped memory for _yolo_filter_forward.5']
  #allocation3 [shape = 'f32[1]{0:T(128)S(6)}', space=smem, size = 0x200, scoped, tag = 'prefetched SMEM operand 0']
  %s0 = inlined_call_operand.<no memory space> [shape: f32[1], index: 0, kind: input, shape index: {}]
  %s1 = inlined_call_operand.vmem [shape: f32[3,4,16], index: 1, kind: input, shape index: {}]
  %s2 = inlined_call_operand.vmem [shape: f32[3,4,16], index: 2, kind: output, shape index: {0}]
  %s3 = inlined_call_operand.vmem [shape: s32[3,1,16], index: 3, kind: output, shape index: {1}]
  %4 = xla_tuple %s2, %s3
  %s5 = sld [smem:[#allocation0]]
  $region45: #{_yolo_filter_forward.5} parent=0
    _
  %s7 = ssub.s32 1, %s5
  %s8 = scalar_select 0, %s7, %s5
  %9 = sst [smem:[#allocation3]] %s0
  loop: start=0, step=1, limit=5
  $region2: #{_yolo_filter_forward.5} parent=0 // loop_pre_header
    _
  $region3: #{_yolo_filter_forward.5} parent=0 // loop_header
    %s11 = sphi 0, %s15
    %p12 = scmp.ge.s32.totalorder %s11, 5
    %s18 = sphi 0, %s30
    %s19 = sphi 0, %s26
    %s20 = sphi 0, %s18
    %s21 = sphi 0, %s19
    %s22 = sphi 0, %s20
    %s23 = sphi 0, %s21
    %s35 = sphi 0, %s37
    %s38 = sphi 0, %s35
    %s39 = sphi 0, %s38
    %s55 = sphi 0, %s39
    %s63 = sphi 0, %s65
    %s66 = sphi 0, %s63
    %s67 = sphi 0, %s66
    %s83 = sphi 0, %s67
    %s91 = sphi 0, %s93
    %s94 = sphi 0, %s91
    %s95 = sphi 0, %s94
    %s111 = sphi 0, %s95
  $region4: #{_yolo_filter_forward.5} parent=0 // loop_header_branch
    %14 = sbr.rel (%p12) target = $region8
  $region5: #{_yolo_filter_forward.5} parent=0 // loop_body
    %s16 = ssub.s32 %s11, 1
    %s17 = ssub.s32 %s11, 2
    %s24 = sadd.s32 1, %s19
    %p25 = scmp.ge.s32.totalorder %s24, 1
    %s26 = scalar_select %p25, 0, %s24
    %s27 = sadd.s32 1, %s18
    %s28 = scalar_select %p25, %s27, %s18
    %p29 = scmp.ge.s32.totalorder %s28, 3
    %s30 = scalar_select %p29, 0, %s28
    %s31 = ssub.s32 %s18, %s30
    %s32 = ssub.s32 %s19, %s26
    %s33 = sor.u32 %s31, %s32
    %p34 = scmp.eq.s32.totalorder %s33, 0
    %s36 = sadd.s32 %s35, 1
    %s37 = scalar_select %p34, %s35, %s36
    %p40 = pneg %p34
    %p41 = scmp.eq.s32.totalorder %s11, 2
    %p42 = por %p40, %p41
    %p43 = scmp.ne.s32.totalorder %s35, %s38
    %p44 = scmp.eq.s32.totalorder %s11, 0
    %p45 = por %p43, %p44
    %p46 = scmp.ne.s32.totalorder %s35, %s38
    %p47 = scmp.eq.s32.totalorder %s16, 2
    %p48 = por %p46, %p47
    %p49 = scmp.ne.s32.totalorder %s38, %s39
    %p50 = scmp.eq.s32.totalorder %s16, 0
    %p51 = por %p49, %p50
    %p52 = scmp.ne.s32.totalorder %s38, %s39
    %p53 = scmp.eq.s32.totalorder %s17, 2
    %p54 = por %p52, %p53
    %p56 = scmp.ne.s32.totalorder %s39, %s55
    %p57 = scmp.eq.s32.totalorder %s17, 0
    %p58 = por %p56, %p57
    %s59 = ssub.s32 %s18, %s30
    %s60 = ssub.s32 %s19, %s26
    %s61 = sor.u32 %s59, %s60
    %p62 = scmp.eq.s32.totalorder %s61, 0
    %s64 = sadd.s32 %s63, 1
    %s65 = scalar_select %p62, %s63, %s64
    %p68 = pneg %p62
    %p69 = scmp.eq.s32.totalorder %s11, 2
    %p70 = por %p68, %p69
    %p71 = scmp.ne.s32.totalorder %s63, %s66
    %p72 = scmp.eq.s32.totalorder %s11, 0
    %p73 = por %p71, %p72
    %p74 = scmp.ne.s32.totalorder %s63, %s66
    %p75 = scmp.eq.s32.totalorder %s16, 2
    %p76 = por %p74, %p75
    %p77 = scmp.ne.s32.totalorder %s66, %s67
    %p78 = scmp.eq.s32.totalorder %s16, 0
    %p79 = por %p77, %p78
    %p80 = scmp.ne.s32.totalorder %s66, %s67
    %p81 = scmp.eq.s32.totalorder %s17, 2
    %p82 = por %p80, %p81
    %p84 = scmp.ne.s32.totalorder %s67, %s83
    %p85 = scmp.eq.s32.totalorder %s17, 0
    %p86 = por %p84, %p85
    %s87 = ssub.s32 %s18, %s30
    %s88 = ssub.s32 %s19, %s26
    %s89 = sor.u32 %s87, %s88
    %p90 = scmp.eq.s32.totalorder %s89, 0
    %s92 = sadd.s32 %s91, 1
    %s93 = scalar_select %p90, %s91, %s92
    %p96 = pneg %p90
    %p97 = scmp.eq.s32.totalorder %s11, 2
    %p98 = por %p96, %p97
    %p99 = scmp.ne.s32.totalorder %s91, %s94
    %p100 = scmp.eq.s32.totalorder %s11, 0
    %p101 = por %p99, %p100
    %p102 = scmp.ne.s32.totalorder %s91, %s94
    %p103 = scmp.eq.s32.totalorder %s16, 2
    %p104 = por %p102, %p103
    %p105 = scmp.ne.s32.totalorder %s94, %s95
    %p106 = scmp.eq.s32.totalorder %s16, 0
    %p107 = por %p105, %p106
    %p108 = scmp.ne.s32.totalorder %s94, %s95
    %p109 = scmp.eq.s32.totalorder %s17, 2
    %p110 = por %p108, %p109
    %p112 = scmp.ne.s32.totalorder %s95, %s111
    %p113 = scmp.eq.s32.totalorder %s17, 0
    %p114 = por %p112, %p113
    %p115 = scmp.le.s32.totalorder 1, %s11
    %p116 = scmp.lt.s32.totalorder %s11, 4
    %p117 = pnand %p115, %p116
    %p118 = pneg %p117
    // Predicated region
    $region9: #{_yolo_filter_forward.5} parent=5 // pred_check
      _
    $region10: #{_yolo_filter_forward.5} parent=5 // pred_check_branch
      %120 = sbr.rel (%p117) target = $region12
    $region11: #{_yolo_filter_forward.5} parent=5 // pred_region
      %s121 = ssub.s32 %s11, 1
    $region12: #{_yolo_filter_forward.5} parent=5 // pred_fallthru
      _
    %p122 = scmp.lt.s32.totalorder %s11, 3
    // Predicated region
    $region13: #{_yolo_filter_forward.5} parent=5 // pred_check
      %p123 = pneg %p122
    $region14: #{_yolo_filter_forward.5} parent=5 // pred_check_branch
      %125 = sbr.rel (%p123) target = $region16
    $region15: #{_yolo_filter_forward.5} parent=5 // pred_region
      // Predicated region
      $region17: #{_yolo_filter_forward.5} parent=15 // pred_check
        %p126 = pneg %p45
      $region18: #{_yolo_filter_forward.5} parent=15 // pred_check_branch
        %128 = sbr.rel (%p126) target = $region20
      $region19: #{_yolo_filter_forward.5} parent=15 // pred_region
        %p129 = scmp.lt.s32.totalorder %s18, 2
        %s130 = scalar_select %p129, %s18, 2
        %p131 = scmp.lt.s32.totalorder %s19, 0
        %s132 = scalar_select %p131, %s19, 0
        %s133 = sadd.s32 %s132, %s130
        %s134 = smul.addr %s133, 4
        %s135 = scalar_lea.vmem %s1, %s134
      $region20: #{_yolo_filter_forward.5} parent=15 // pred_fallthru
        _
    $region16: #{_yolo_filter_forward.5} parent=5 // pred_fallthru
      _
    %p136 = scmp.le.s32.totalorder 1, %s11
    %p137 = scmp.lt.s32.totalorder %s11, 4
    %p138 = pnand %p136, %p137
    %p139 = pneg %p138
    // Predicated region
    $region21: #{_yolo_filter_forward.5} parent=5 // pred_check
      _
    $region22: #{_yolo_filter_forward.5} parent=5 // pred_check_branch
      %141 = sbr.rel (%p138) target = $region24
    $region23: #{_yolo_filter_forward.5} parent=5 // pred_region
      %s142 = ssub.s32 %s11, 1
      %p143 = scmp.lt.s32.totalorder %s20, 2
      %s144 = scalar_select %p143, %s20, 2
      %p145 = scmp.lt.s32.totalorder %s21, 0
      %s146 = scalar_select %p145, %s21, 0
      %s147 = sadd.s32 %s146, %s144
      %s148 = smul.addr %s147, 4
      %s149 = scalar_lea.vmem %s1, %s148
      %p150 = pneg %p51
      %p151 = pneg %p48
      %p152 = pneg %p79
      %p153 = pneg %p76
      %p154 = scmp.lt.s32.totalorder %s20, 2
      %s155 = scalar_select %p154, %s20, 2
      %p156 = scmp.lt.s32.totalorder %s21, 0
      %s157 = scalar_select %p156, %s21, 0
      %s158 = sadd.s32 %s157, %s155
      %s159 = smul.addr %s158, 4
      %s160 = scalar_lea.vmem %s2, %s159
      %p161 = pneg %p107
      %p162 = pneg %p104
      %p163 = scmp.lt.s32.totalorder %s20, 2
      %s164 = scalar_select %p163, %s20, 2
      %p165 = scmp.lt.s32.totalorder %s21, 0
      %s166 = scalar_select %p165, %s21, 0
      %s167 = sadd.s32 %s166, %s164
      %s168 = scalar_lea.vmem %s3, %s167
      %p169 = scmp.lt.s32.totalorder %s20, 2
      %s170 = scalar_select %p169, %s20, 2
      %p171 = scmp.lt.s32.totalorder %s21, 0
      %s172 = scalar_select %p171, %s21, 0
      %s173 = sadd.s32 %s172, %s170
      %s174 = smul.addr %s173, 4
      %s175 = scalar_lea.vmem %s1, %s174
      %p176 = scmp.lt.s32.totalorder %s20, 2
      %s177 = scalar_select %p176, %s20, 2
      %p178 = scmp.lt.s32.totalorder %s21, 0
      %s179 = scalar_select %p178, %s21, 0
      %s180 = sadd.s32 %s179, %s177
      %s181 = smul.addr %s180, 4
      %s182 = scalar_lea.vmem %s2, %s181
      %p183 = scmp.lt.s32.totalorder %s20, 2
      %s184 = scalar_select %p183, %s20, 2
      %p185 = scmp.lt.s32.totalorder %s21, 0
      %s186 = scalar_select %p185, %s21, 0
      %s187 = sadd.s32 %s186, %s184
      %s188 = scalar_lea.vmem %s3, %s187
      %s189 = sld [smem:[#allocation3]]
      %v190 = vld [vmem:[%s175] sm:$0x1]
      %v191 = vld [vmem:[%s175 + $0x1] sm:$0x1]
      %v192 = vmax.f32 %v190, %v191
      %v193 = vstv %s189
      %vm194 = vcmp.ge.f32.partialorder %v192, %v193
      %v195 = vld [vmem:[%s175] sm:$0xf]
      %v196 = vsel %vm194, 1, 0
      %v197 = vlaneseq
      %v198 = vshrl.u32 %v197, 7
      %v199 = vsub.s32 0, %v198
      %v200 = vrot.slane %v196, %v199
      %vm201 = vcmp.eq.s32.totalorder %v200, 1
      %v202 = vsel %vm201, %v195, 0.0
      %vm203 = vcmask 125952
      %204 = vst.msk [vmem:[%s182] sm:$0xf] %vm203, %v202
      %vm205 = vcmask 122880
      %206 = vst.msk [vmem:[%s188] sm:$0x1] %vm205, %v196
      %p207 = scmp.lt.s32.totalorder %s20, 2
      %s208 = scalar_select %p207, %s20, 2
      %p209 = scmp.lt.s32.totalorder %s21, 0
      %s210 = scalar_select %p209, %s21, 0
      %s211 = sadd.s32 %s210, %s208
      %s212 = smul.addr %s211, 4
      %s213 = scalar_lea.vmem %s2, %s212
      %p214 = scmp.lt.s32.totalorder %s20, 2
      %s215 = scalar_select %p214, %s20, 2
      %p216 = scmp.lt.s32.totalorder %s21, 0
      %s217 = scalar_select %p216, %s21, 0
      %s218 = sadd.s32 %s217, %s215
      %s219 = scalar_lea.vmem %s3, %s218
      // Predicated region
      $region25: #{_yolo_filter_forward.5} parent=23 // pred_check
        %p220 = pneg %p76
      $region26: #{_yolo_filter_forward.5} parent=23 // pred_check_branch
        %222 = sbr.rel (%p220) target = $region28
      $region27: #{_yolo_filter_forward.5} parent=23 // pred_region
        _
      $region28: #{_yolo_filter_forward.5} parent=23 // pred_fallthru
        _
      // Predicated region
      $region29: #{_yolo_filter_forward.5} parent=23 // pred_check
        %p223 = pneg %p104
      $region30: #{_yolo_filter_forward.5} parent=23 // pred_check_branch
        %225 = sbr.rel (%p223) target = $region32
      $region31: #{_yolo_filter_forward.5} parent=23 // pred_region
        _
      $region32: #{_yolo_filter_forward.5} parent=23 // pred_fallthru
        _
    $region24: #{_yolo_filter_forward.5} parent=5 // pred_fallthru
      _
    %p226 = scmp.le.s32.totalorder 2, %s11
    // Predicated region
    $region33: #{_yolo_filter_forward.5} parent=5 // pred_check
      %p227 = pneg %p226
    $region34: #{_yolo_filter_forward.5} parent=5 // pred_check_branch
      %229 = sbr.rel (%p227) target = $region36
    $region35: #{_yolo_filter_forward.5} parent=5 // pred_region
      %s230 = ssub.s32 %s11, 2
      // Predicated region
      $region37: #{_yolo_filter_forward.5} parent=35 // pred_check
        %p231 = pneg %p82
      $region38: #{_yolo_filter_forward.5} parent=35 // pred_check_branch
        %233 = sbr.rel (%p231) target = $region40
      $region39: #{_yolo_filter_forward.5} parent=35 // pred_region
        %p234 = scmp.lt.s32.totalorder %s22, 2
        %s235 = scalar_select %p234, %s22, 2
        %p236 = scmp.lt.s32.totalorder %s23, 0
        %s237 = scalar_select %p236, %s23, 0
        %s238 = sadd.s32 %s237, %s235
        %s239 = smul.addr %s238, 4
        %s240 = scalar_lea.vmem %s2, %s239
      $region40: #{_yolo_filter_forward.5} parent=35 // pred_fallthru
        _
      // Predicated region
      $region41: #{_yolo_filter_forward.5} parent=35 // pred_check
        %p241 = pneg %p110
      $region42: #{_yolo_filter_forward.5} parent=35 // pred_check_branch
        %243 = sbr.rel (%p241) target = $region44
      $region43: #{_yolo_filter_forward.5} parent=35 // pred_region
        %p244 = scmp.lt.s32.totalorder %s22, 2
        %s245 = scalar_select %p244, %s22, 2
        %p246 = scmp.lt.s32.totalorder %s23, 0
        %s247 = scalar_select %p246, %s23, 0
        %s248 = sadd.s32 %s247, %s245
        %s249 = scalar_lea.vmem %s3, %s248
      $region44: #{_yolo_filter_forward.5} parent=35 // pred_fallthru
        _
    $region36: #{_yolo_filter_forward.5} parent=5 // pred_fallthru
      _
  $region6: #{_yolo_filter_forward.5} parent=0 // loop_footer
    %s15 = sadd.s32 1, %s11
  $region7: #{_yolo_filter_forward.5} parent=0 // loop_footer_branch
    %10 = sbr.rel target = $region3
  $region8: #{_yolo_filter_forward.5} parent=0 // loop_exit
    _

</llo_original>
